<compile_context>
chip_gen: v6e
topology: v6e:2x2x1
jax: 0.10.0
libtpu: 0.0.40
codegen_flags: <defaults>
</compile_context>

<pallas_src>
import jax
import jax.numpy as jnp
from jax.experimental import pallas as pl
from jax.experimental.pallas import tpu as pltpu

# --- replicate the module's globals -------------------------------------------------
sentence = ('Lorem ipsum dolor sit amet consectetur adipisicing elit sed do eiusmod '
            'tempor incididunt ut labore et dolore magna aliqua Ut enim ad minim '
            'veniam quis nostrud exercitation')
word_dict = {w: i for i, w in enumerate(list(set(sentence.split())))}
n_class = len(word_dict)   # 27
n_hidden = 5               # LSTM hidden size (per direction)


# --- Pallas kernel -------------------------------------------------------------------
def bilstm_kernel(x_ref,        # (B, T, C)   batch-major inputs (no transpose needed)
                  wih_ref,      # (C, 8H)     [W_ih_fwd | W_ih_bwd], pre-transposed
                  b_ref,        # (1, 8H)     [b_fwd | b_bwd] (b_ih + b_hh already summed)
                  whh_ref,      # (H, 4H)     forward-direction recurrent weights
                  wlin_ref,     # (2H, C)     linear head
                  blin_ref,     # (1, C)
                  out_ref):     # (B, C)
    B, T, C = x_ref.shape
    H = whh_ref.shape[0]
    G = 4 * H

    # ---- hoisted input projection for BOTH directions + bias: one MXU matmul ----
    x2d = x_ref[...].reshape(B * T, C)                       # merge leading dims (lanes kept)
    xproj = (jnp.dot(x2d, wih_ref[...], preferred_element_type=jnp.float32)
             + b_ref[...])                                   # (B*T, 8H)
    xproj = xproj.reshape(B, T, 2 * G)                       # (B, T, 8H), lanes kept

    whh = whh_ref[...]                                       # (H, 4H)

    def gate_nonlin(gates):
        # Two full-width EUP passes over the (B, 4H) slab instead of four per-gate slivers.
        sig = jax.nn.sigmoid(gates)
        tg = jnp.tanh(gates)
        return (sig[:, 0 * H:1 * H],    # i
                sig[:, 1 * H:2 * H],    # f
                tg[:, 2 * H:3 * H],     # g
                sig[:, 3 * H:4 * H])    # o

    h = jnp.zeros((B, H), jnp.float32)
    c = jnp.zeros((B, H), jnp.float32)

    # ---- forward recurrence, fully unrolled (T static & tiny); bias already folded ----
    # TODO(synk): if per-step MXU push/pop latency dominates, replace jnp.dot(h, whh) with
    # K=H unrolled VPU broadcast-multiply-adds and benchmark both.
    for t in range(T):
        gates = xproj[:, t, 0:G] + jnp.dot(h, whh, preferred_element_type=jnp.float32)
        i, f, g, o = gate_nonlin(gates)
        c = f * c + i * g
        h = o * jnp.tanh(c)

    # ---- backward direction: single cell step on x[T-1] from zero state ----
    # (exactly what outputs[-1] of PyTorch's bidirectional LSTM uses; h@W_hh_bwd term is 0)
    gates_b = xproj[:, T - 1, G:2 * G]
    i_b, _, g_b, o_b = gate_nonlin(gates_b)
    h_b = o_b * jnp.tanh(i_b * g_b)

    # ---- linear head ----
    feat = jnp.concatenate([h, h_b], axis=-1)                # (B, 2H)
    out_ref[...] = (jnp.dot(feat, wlin_ref[...], preferred_element_type=jnp.float32)
                    + blin_ref[...])


# --- wrapper -------------------------------------------------------------------------
def pack_params(params):
    """Fuse both directions' input weights/biases so the kernel's hoisted projection
    computes forward and backward gates in one matmul (W_hh_bwd is provably unused)."""
    return dict(
        wih=jnp.concatenate([params['wih_f'], params['wih_b']], axis=1),   # (C, 8H)
        b=jnp.concatenate([params['b_f'], params['b_b']], axis=1),         # (1, 8H)
        whh=params['whh_f'],                                               # (H, 4H)
        wlin=params['wlin'],                                               # (2H, C)
        blin=params['blin'],                                               # (1, C)
    )


def bilstm_forward(x, packed):
    """x: (batch, seq, n_class) float32 -> (batch, n_class) float32."""
    B, T, C = x.shape
    H = n_hidden
    x = x.astype(jnp.float32)

    flops = (2 * B * T * C * 8 * H          # hoisted input projection (both directions)
             + 2 * T * B * H * 4 * H        # per-step recurrent matmuls
             + 2 * B * 2 * H * C)           # linear head
    transcendentals = (T + 1) * (2 * B * 4 * H + B * H)
    bytes_accessed = 4 * (B * T * C + C * 8 * H + 8 * H
                          + H * 4 * H + 2 * H * C + C + B * C)

    vmem = pl.BlockSpec(memory_space=pltpu.MemorySpace.VMEM)
    return pl.pallas_call(
        bilstm_kernel,
        out_shape=jax.ShapeDtypeStruct((B, C), jnp.float32),
        in_specs=[vmem] * 6,
        out_specs=vmem,
        cost_estimate=pl.CostEstimate(flops=flops,
                                      transcendentals=transcendentals,
                                      bytes_accessed=bytes_accessed),
    )(x, packed['wih'], packed['b'], packed['whh'], packed['wlin'], packed['blin'])


# --- deterministic parameter init (matches nn.LSTM / nn.Linear shapes) ----------------
def init_params(key):
    H, C = n_hidden, n_class
    ks = jax.random.split(key, 10)
    lstm_bound = 1.0 / jnp.sqrt(H)
    lin_bound = 1.0 / jnp.sqrt(2 * H)

    def u(k, shape, bound):
        return jax.random.uniform(k, shape, jnp.float32, -bound, bound)

    # PyTorch stores W_ih: (4H, C), W_hh: (4H, H); pre-transpose for x @ W.
    wih_f = u(ks[0], (4 * H, C), lstm_bound).T          # (C, 4H)
    whh_f = u(ks[1], (4 * H, H), lstm_bound).T          # (H, 4H)
    b_f = (u(ks[2], (4 * H,), lstm_bound)
           + u(ks[3], (4 * H,), lstm_bound))[None, :]   # b_ih + b_hh -> (1, 4H)
    wih_b = u(ks[4], (4 * H, C), lstm_bound).T
    whh_b = u(ks[5], (4 * H, H), lstm_bound).T
    b_b = (u(ks[6], (4 * H,), lstm_bound)
           + u(ks[7], (4 * H,), lstm_bound))[None, :]
    wlin = u(ks[8], (C, 2 * H), lin_bound).T            # (2H, C)
    blin = u(ks[9], (C,), lin_bound)[None, :]           # (1, C)

    return dict(wih_f=wih_f, whh_f=whh_f, b_f=b_f,
                wih_b=wih_b, whh_b=whh_b, b_b=b_b,
                wlin=wlin, blin=blin)


# --- pure-JAX reference (mirrors PyTorch bidirectional LSTM + Linear on outputs[-1]) --
def bilstm_reference(x, params):
    B, T, C = x.shape
    H = n_hidden
    x_tm = jnp.transpose(x, (1, 0, 2))

    def cell(x_t, h, c, wih, whh, b):
        gates = x_t @ wih + h @ whh + b
        i = jax.nn.sigmoid(gates[:, 0 * H:1 * H])
        f = jax.nn.sigmoid(gates[:, 1 * H:2 * H])
        g = jnp.tanh(gates[:, 2 * H:3 * H])
        o = jax.nn.sigmoid(gates[:, 3 * H:4 * H])
        c_new = f * c + i * g
        return o * jnp.tanh(c_new), c_new

    h = jnp.zeros((B, H), jnp.float32)
    c = jnp.zeros((B, H), jnp.float32)
    for t in range(T):
        h, c = cell(x_tm[t], h, c, params['wih_f'], params['whh_f'], params['b_f'])
    h0 = jnp.zeros((B, H), jnp.float32)
    hb, _ = cell(x_tm[T - 1], h0, h0, params['wih_b'], params['whh_b'], params['b_b'])
    feat = jnp.concatenate([h, hb], axis=-1)
    return feat @ params['wlin'] + params['blin']


if __name__ == "__main__":
    key = jax.random.PRNGKey(0)
    k_param, k_x = jax.random.split(key)

    params = init_params(k_param)
    packed = pack_params(params)

    batch, seq = 2, 8
    x = jax.random.normal(k_x, (batch, seq, n_class), jnp.float32)

    out = bilstm_forward(x, packed)
    out = jax.block_until_ready(out)

    ref = bilstm_reference(x, params)
    assert out.shape == (batch, n_class)
    assert jnp.allclose(out, ref, atol=1e-5, rtol=1e-5)

    print("KERNEL_OK")
</pallas_src>

<mosaic_0001>
module attributes {stable_mosaic.version = 11 : i64} {
  func.func @bilstm_kernel(%arg0: memref<2x8x27xf32, #tpu.memory_space<vmem>>, %arg1: memref<27x40xf32, #tpu.memory_space<vmem>>, %arg2: memref<1x40xf32, #tpu.memory_space<vmem>>, %arg3: memref<5x20xf32, #tpu.memory_space<vmem>>, %arg4: memref<10x27xf32, #tpu.memory_space<vmem>>, %arg5: memref<1x27xf32, #tpu.memory_space<vmem>>, %arg6: memref<2x27xf32, #tpu.memory_space<vmem>>) attributes {dimension_semantics = [], scalar_prefetch = 0 : i64, scratch_operands = 0 : i64, tpu.core_type = #tpu.core_type<tc>} {
    %c0 = arith.constant 0 : index
    %c0_0 = arith.constant 0 : index
    %c0_1 = arith.constant 0 : index
    %0 = vector.load %arg0[%c0, %c0_0, %c0_1] : memref<2x8x27xf32, #tpu.memory_space<vmem>>, vector<2x8x27xf32>
    %1 = vector.shape_cast %0 : vector<2x8x27xf32> to vector<16x27xf32>
    %c0_2 = arith.constant 0 : index
    %c0_3 = arith.constant 0 : index
    %2 = vector.load %arg1[%c0_2, %c0_3] : memref<27x40xf32, #tpu.memory_space<vmem>>, vector<27x40xf32>
    %cst = arith.constant dense<0.000000e+00> : vector<16x40xf32>
    %3 = tpu.matmul %1, %2, %cst {dimension_numbers = #tpu.dot_dimension_numbers<[1], [0], [0], [1], [0, 0, 1, 1], [], []>} : vector<16x27xf32>, vector<27x40xf32>, vector<16x40xf32> -> vector<16x40xf32>
    %c0_4 = arith.constant 0 : index
    %c0_5 = arith.constant 0 : index
    %4 = vector.load %arg2[%c0_4, %c0_5] : memref<1x40xf32, #tpu.memory_space<vmem>>, vector<1x40xf32>
    %5 = vector.broadcast %4 : vector<1x40xf32> to vector<16x40xf32>
    %6 = arith.addf %3, %5 : vector<16x40xf32>
    %7 = vector.shape_cast %6 : vector<16x40xf32> to vector<2x8x40xf32>
    %c0_6 = arith.constant 0 : index
    %c0_7 = arith.constant 0 : index
    %8 = vector.load %arg3[%c0_6, %c0_7] : memref<5x20xf32, #tpu.memory_space<vmem>>, vector<5x20xf32>
    %cst_8 = arith.constant 0.000000e+00 : f32
    %9 = vector.broadcast %cst_8 : f32 to vector<2x5xf32>
    %cst_9 = arith.constant 0.000000e+00 : f32
    %10 = vector.broadcast %cst_9 : f32 to vector<2x5xf32>
    %11 = vector.extract_strided_slice %7 {offsets = [0, 0, 0], sizes = [2, 1, 20], strides = [1, 1, 1]} : vector<2x8x40xf32> to vector<2x1x20xf32>
    %12 = vector.shape_cast %11 : vector<2x1x20xf32> to vector<2x20xf32>
    %cst_10 = arith.constant dense<0.000000e+00> : vector<2x20xf32>
    %13 = tpu.matmul %9, %8, %cst_10 {dimension_numbers = #tpu.dot_dimension_numbers<[1], [0], [0], [1], [0, 0, 1, 1], [], []>} : vector<2x5xf32>, vector<5x20xf32>, vector<2x20xf32> -> vector<2x20xf32>
    %14 = arith.addf %12, %13 : vector<2x20xf32>
    %15 = arith.negf %14 : vector<2x20xf32>
    %16 = math.exp %15 : vector<2x20xf32>
    %cst_11 = arith.constant 1.000000e+00 : f32
    %17 = vector.broadcast %cst_11 : f32 to vector<2x20xf32>
    %18 = arith.addf %17, %16 : vector<2x20xf32>
    %19 = arith.divf %17, %18 : vector<2x20xf32>
    %20 = math.tanh %14 : vector<2x20xf32>
    %21 = vector.extract_strided_slice %19 {offsets = [0, 0], sizes = [2, 5], strides = [1, 1]} : vector<2x20xf32> to vector<2x5xf32>
    %22 = vector.extract_strided_slice %19 {offsets = [0, 5], sizes = [2, 5], strides = [1, 1]} : vector<2x20xf32> to vector<2x5xf32>
    %23 = vector.extract_strided_slice %20 {offsets = [0, 10], sizes = [2, 5], strides = [1, 1]} : vector<2x20xf32> to vector<2x5xf32>
    %24 = vector.extract_strided_slice %19 {offsets = [0, 15], sizes = [2, 5], strides = [1, 1]} : vector<2x20xf32> to vector<2x5xf32>
    %25 = arith.mulf %22, %10 : vector<2x5xf32>
    %26 = arith.mulf %21, %23 : vector<2x5xf32>
    %27 = arith.addf %25, %26 : vector<2x5xf32>
    %28 = math.tanh %27 : vector<2x5xf32>
    %29 = arith.mulf %24, %28 : vector<2x5xf32>
    %30 = vector.extract_strided_slice %7 {offsets = [0, 1, 0], sizes = [2, 1, 20], strides = [1, 1, 1]} : vector<2x8x40xf32> to vector<2x1x20xf32>
    %31 = vector.shape_cast %30 : vector<2x1x20xf32> to vector<2x20xf32>
    %cst_12 = arith.constant dense<0.000000e+00> : vector<2x20xf32>
    %32 = tpu.matmul %29, %8, %cst_12 {dimension_numbers = #tpu.dot_dimension_numbers<[1], [0], [0], [1], [0, 0, 1, 1], [], []>} : vector<2x5xf32>, vector<5x20xf32>, vector<2x20xf32> -> vector<2x20xf32>
    %33 = arith.addf %31, %32 : vector<2x20xf32>
    %34 = arith.negf %33 : vector<2x20xf32>
    %35 = math.exp %34 : vector<2x20xf32>
    %cst_13 = arith.constant 1.000000e+00 : f32
    %36 = vector.broadcast %cst_13 : f32 to vector<2x20xf32>
    %37 = arith.addf %36, %35 : vector<2x20xf32>
    %38 = arith.divf %36, %37 : vector<2x20xf32>
    %39 = math.tanh %33 : vector<2x20xf32>
    %40 = vector.extract_strided_slice %38 {offsets = [0, 0], sizes = [2, 5], strides = [1, 1]} : vector<2x20xf32> to vector<2x5xf32>
    %41 = vector.extract_strided_slice %38 {offsets = [0, 5], sizes = [2, 5], strides = [1, 1]} : vector<2x20xf32> to vector<2x5xf32>
    %42 = vector.extract_strided_slice %39 {offsets = [0, 10], sizes = [2, 5], strides = [1, 1]} : vector<2x20xf32> to vector<2x5xf32>
    %43 = vector.extract_strided_slice %38 {offsets = [0, 15], sizes = [2, 5], strides = [1, 1]} : vector<2x20xf32> to vector<2x5xf32>
    %44 = arith.mulf %41, %27 : vector<2x5xf32>
    %45 = arith.mulf %40, %42 : vector<2x5xf32>
    %46 = arith.addf %44, %45 : vector<2x5xf32>
    %47 = math.tanh %46 : vector<2x5xf32>
    %48 = arith.mulf %43, %47 : vector<2x5xf32>
    %49 = vector.extract_strided_slice %7 {offsets = [0, 2, 0], sizes = [2, 1, 20], strides = [1, 1, 1]} : vector<2x8x40xf32> to vector<2x1x20xf32>
    %50 = vector.shape_cast %49 : vector<2x1x20xf32> to vector<2x20xf32>
    %cst_14 = arith.constant dense<0.000000e+00> : vector<2x20xf32>
    %51 = tpu.matmul %48, %8, %cst_14 {dimension_numbers = #tpu.dot_dimension_numbers<[1], [0], [0], [1], [0, 0, 1, 1], [], []>} : vector<2x5xf32>, vector<5x20xf32>, vector<2x20xf32> -> vector<2x20xf32>
    %52 = arith.addf %50, %51 : vector<2x20xf32>
    %53 = arith.negf %52 : vector<2x20xf32>
    %54 = math.exp %53 : vector<2x20xf32>
    %cst_15 = arith.constant 1.000000e+00 : f32
    %55 = vector.broadcast %cst_15 : f32 to vector<2x20xf32>
    %56 = arith.addf %55, %54 : vector<2x20xf32>
    %57 = arith.divf %55, %56 : vector<2x20xf32>
    %58 = math.tanh %52 : vector<2x20xf32>
    %59 = vector.extract_strided_slice %57 {offsets = [0, 0], sizes = [2, 5], strides = [1, 1]} : vector<2x20xf32> to vector<2x5xf32>
    %60 = vector.extract_strided_slice %57 {offsets = [0, 5], sizes = [2, 5], strides = [1, 1]} : vector<2x20xf32> to vector<2x5xf32>
    %61 = vector.extract_strided_slice %58 {offsets = [0, 10], sizes = [2, 5], strides = [1, 1]} : vector<2x20xf32> to vector<2x5xf32>
    %62 = vector.extract_strided_slice %57 {offsets = [0, 15], sizes = [2, 5], strides = [1, 1]} : vector<2x20xf32> to vector<2x5xf32>
    %63 = arith.mulf %60, %46 : vector<2x5xf32>
    %64 = arith.mulf %59, %61 : vector<2x5xf32>
    %65 = arith.addf %63, %64 : vector<2x5xf32>
    %66 = math.tanh %65 : vector<2x5xf32>
    %67 = arith.mulf %62, %66 : vector<2x5xf32>
    %68 = vector.extract_strided_slice %7 {offsets = [0, 3, 0], sizes = [2, 1, 20], strides = [1, 1, 1]} : vector<2x8x40xf32> to vector<2x1x20xf32>
    %69 = vector.shape_cast %68 : vector<2x1x20xf32> to vector<2x20xf32>
    %cst_16 = arith.constant dense<0.000000e+00> : vector<2x20xf32>
    %70 = tpu.matmul %67, %8, %cst_16 {dimension_numbers = #tpu.dot_dimension_numbers<[1], [0], [0], [1], [0, 0, 1, 1], [], []>} : vector<2x5xf32>, vector<5x20xf32>, vector<2x20xf32> -> vector<2x20xf32>
    %71 = arith.addf %69, %70 : vector<2x20xf32>
    %72 = arith.negf %71 : vector<2x20xf32>
    %73 = math.exp %72 : vector<2x20xf32>
    %cst_17 = arith.constant 1.000000e+00 : f32
    %74 = vector.broadcast %cst_17 : f32 to vector<2x20xf32>
    %75 = arith.addf %74, %73 : vector<2x20xf32>
    %76 = arith.divf %74, %75 : vector<2x20xf32>
    %77 = math.tanh %71 : vector<2x20xf32>
    %78 = vector.extract_strided_slice %76 {offsets = [0, 0], sizes = [2, 5], strides = [1, 1]} : vector<2x20xf32> to vector<2x5xf32>
    %79 = vector.extract_strided_slice %76 {offsets = [0, 5], sizes = [2, 5], strides = [1, 1]} : vector<2x20xf32> to vector<2x5xf32>
    %80 = vector.extract_strided_slice %77 {offsets = [0, 10], sizes = [2, 5], strides = [1, 1]} : vector<2x20xf32> to vector<2x5xf32>
    %81 = vector.extract_strided_slice %76 {offsets = [0, 15], sizes = [2, 5], strides = [1, 1]} : vector<2x20xf32> to vector<2x5xf32>
    %82 = arith.mulf %79, %65 : vector<2x5xf32>
    %83 = arith.mulf %78, %80 : vector<2x5xf32>
    %84 = arith.addf %82, %83 : vector<2x5xf32>
    %85 = math.tanh %84 : vector<2x5xf32>
    %86 = arith.mulf %81, %85 : vector<2x5xf32>
    %87 = vector.extract_strided_slice %7 {offsets = [0, 4, 0], sizes = [2, 1, 20], strides = [1, 1, 1]} : vector<2x8x40xf32> to vector<2x1x20xf32>
    %88 = vector.shape_cast %87 : vector<2x1x20xf32> to vector<2x20xf32>
    %cst_18 = arith.constant dense<0.000000e+00> : vector<2x20xf32>
    %89 = tpu.matmul %86, %8, %cst_18 {dimension_numbers = #tpu.dot_dimension_numbers<[1], [0], [0], [1], [0, 0, 1, 1], [], []>} : vector<2x5xf32>, vector<5x20xf32>, vector<2x20xf32> -> vector<2x20xf32>
    %90 = arith.addf %88, %89 : vector<2x20xf32>
    %91 = arith.negf %90 : vector<2x20xf32>
    %92 = math.exp %91 : vector<2x20xf32>
    %cst_19 = arith.constant 1.000000e+00 : f32
    %93 = vector.broadcast %cst_19 : f32 to vector<2x20xf32>
    %94 = arith.addf %93, %92 : vector<2x20xf32>
    %95 = arith.divf %93, %94 : vector<2x20xf32>
    %96 = math.tanh %90 : vector<2x20xf32>
    %97 = vector.extract_strided_slice %95 {offsets = [0, 0], sizes = [2, 5], strides = [1, 1]} : vector<2x20xf32> to vector<2x5xf32>
    %98 = vector.extract_strided_slice %95 {offsets = [0, 5], sizes = [2, 5], strides = [1, 1]} : vector<2x20xf32> to vector<2x5xf32>
    %99 = vector.extract_strided_slice %96 {offsets = [0, 10], sizes = [2, 5], strides = [1, 1]} : vector<2x20xf32> to vector<2x5xf32>
    %100 = vector.extract_strided_slice %95 {offsets = [0, 15], sizes = [2, 5], strides = [1, 1]} : vector<2x20xf32> to vector<2x5xf32>
    %101 = arith.mulf %98, %84 : vector<2x5xf32>
    %102 = arith.mulf %97, %99 : vector<2x5xf32>
    %103 = arith.addf %101, %102 : vector<2x5xf32>
    %104 = math.tanh %103 : vector<2x5xf32>
    %105 = arith.mulf %100, %104 : vector<2x5xf32>
    %106 = vector.extract_strided_slice %7 {offsets = [0, 5, 0], sizes = [2, 1, 20], strides = [1, 1, 1]} : vector<2x8x40xf32> to vector<2x1x20xf32>
    %107 = vector.shape_cast %106 : vector<2x1x20xf32> to vector<2x20xf32>
    %cst_20 = arith.constant dense<0.000000e+00> : vector<2x20xf32>
    %108 = tpu.matmul %105, %8, %cst_20 {dimension_numbers = #tpu.dot_dimension_numbers<[1], [0], [0], [1], [0, 0, 1, 1], [], []>} : vector<2x5xf32>, vector<5x20xf32>, vector<2x20xf32> -> vector<2x20xf32>
    %109 = arith.addf %107, %108 : vector<2x20xf32>
    %110 = arith.negf %109 : vector<2x20xf32>
    %111 = math.exp %110 : vector<2x20xf32>
    %cst_21 = arith.constant 1.000000e+00 : f32
    %112 = vector.broadcast %cst_21 : f32 to vector<2x20xf32>
    %113 = arith.addf %112, %111 : vector<2x20xf32>
    %114 = arith.divf %112, %113 : vector<2x20xf32>
    %115 = math.tanh %109 : vector<2x20xf32>
    %116 = vector.extract_strided_slice %114 {offsets = [0, 0], sizes = [2, 5], strides = [1, 1]} : vector<2x20xf32> to vector<2x5xf32>
    %117 = vector.extract_strided_slice %114 {offsets = [0, 5], sizes = [2, 5], strides = [1, 1]} : vector<2x20xf32> to vector<2x5xf32>
    %118 = vector.extract_strided_slice %115 {offsets = [0, 10], sizes = [2, 5], strides = [1, 1]} : vector<2x20xf32> to vector<2x5xf32>
    %119 = vector.extract_strided_slice %114 {offsets = [0, 15], sizes = [2, 5], strides = [1, 1]} : vector<2x20xf32> to vector<2x5xf32>
    %120 = arith.mulf %117, %103 : vector<2x5xf32>
    %121 = arith.mulf %116, %118 : vector<2x5xf32>
    %122 = arith.addf %120, %121 : vector<2x5xf32>
    %123 = math.tanh %122 : vector<2x5xf32>
    %124 = arith.mulf %119, %123 : vector<2x5xf32>
    %125 = vector.extract_strided_slice %7 {offsets = [0, 6, 0], sizes = [2, 1, 20], strides = [1, 1, 1]} : vector<2x8x40xf32> to vector<2x1x20xf32>
    %126 = vector.shape_cast %125 : vector<2x1x20xf32> to vector<2x20xf32>
    %cst_22 = arith.constant dense<0.000000e+00> : vector<2x20xf32>
    %127 = tpu.matmul %124, %8, %cst_22 {dimension_numbers = #tpu.dot_dimension_numbers<[1], [0], [0], [1], [0, 0, 1, 1], [], []>} : vector<2x5xf32>, vector<5x20xf32>, vector<2x20xf32> -> vector<2x20xf32>
    %128 = arith.addf %126, %127 : vector<2x20xf32>
    %129 = arith.negf %128 : vector<2x20xf32>
    %130 = math.exp %129 : vector<2x20xf32>
    %cst_23 = arith.constant 1.000000e+00 : f32
    %131 = vector.broadcast %cst_23 : f32 to vector<2x20xf32>
    %132 = arith.addf %131, %130 : vector<2x20xf32>
    %133 = arith.divf %131, %132 : vector<2x20xf32>
    %134 = math.tanh %128 : vector<2x20xf32>
    %135 = vector.extract_strided_slice %133 {offsets = [0, 0], sizes = [2, 5], strides = [1, 1]} : vector<2x20xf32> to vector<2x5xf32>
    %136 = vector.extract_strided_slice %133 {offsets = [0, 5], sizes = [2, 5], strides = [1, 1]} : vector<2x20xf32> to vector<2x5xf32>
    %137 = vector.extract_strided_slice %134 {offsets = [0, 10], sizes = [2, 5], strides = [1, 1]} : vector<2x20xf32> to vector<2x5xf32>
    %138 = vector.extract_strided_slice %133 {offsets = [0, 15], sizes = [2, 5], strides = [1, 1]} : vector<2x20xf32> to vector<2x5xf32>
    %139 = arith.mulf %136, %122 : vector<2x5xf32>
    %140 = arith.mulf %135, %137 : vector<2x5xf32>
    %141 = arith.addf %139, %140 : vector<2x5xf32>
    %142 = math.tanh %141 : vector<2x5xf32>
    %143 = arith.mulf %138, %142 : vector<2x5xf32>
    %144 = vector.extract_strided_slice %7 {offsets = [0, 7, 0], sizes = [2, 1, 20], strides = [1, 1, 1]} : vector<2x8x40xf32> to vector<2x1x20xf32>
    %145 = vector.shape_cast %144 : vector<2x1x20xf32> to vector<2x20xf32>
    %cst_24 = arith.constant dense<0.000000e+00> : vector<2x20xf32>
    %146 = tpu.matmul %143, %8, %cst_24 {dimension_numbers = #tpu.dot_dimension_numbers<[1], [0], [0], [1], [0, 0, 1, 1], [], []>} : vector<2x5xf32>, vector<5x20xf32>, vector<2x20xf32> -> vector<2x20xf32>
    %147 = arith.addf %145, %146 : vector<2x20xf32>
    %148 = arith.negf %147 : vector<2x20xf32>
    %149 = math.exp %148 : vector<2x20xf32>
    %cst_25 = arith.constant 1.000000e+00 : f32
    %150 = vector.broadcast %cst_25 : f32 to vector<2x20xf32>
    %151 = arith.addf %150, %149 : vector<2x20xf32>
    %152 = arith.divf %150, %151 : vector<2x20xf32>
    %153 = math.tanh %147 : vector<2x20xf32>
    %154 = vector.extract_strided_slice %152 {offsets = [0, 0], sizes = [2, 5], strides = [1, 1]} : vector<2x20xf32> to vector<2x5xf32>
    %155 = vector.extract_strided_slice %152 {offsets = [0, 5], sizes = [2, 5], strides = [1, 1]} : vector<2x20xf32> to vector<2x5xf32>
    %156 = vector.extract_strided_slice %153 {offsets = [0, 10], sizes = [2, 5], strides = [1, 1]} : vector<2x20xf32> to vector<2x5xf32>
    %157 = vector.extract_strided_slice %152 {offsets = [0, 15], sizes = [2, 5], strides = [1, 1]} : vector<2x20xf32> to vector<2x5xf32>
    %158 = arith.mulf %155, %141 : vector<2x5xf32>
    %159 = arith.mulf %154, %156 : vector<2x5xf32>
    %160 = arith.addf %158, %159 : vector<2x5xf32>
    %161 = math.tanh %160 : vector<2x5xf32>
    %162 = arith.mulf %157, %161 : vector<2x5xf32>
    %163 = vector.extract_strided_slice %7 {offsets = [0, 7, 20], sizes = [2, 1, 20], strides = [1, 1, 1]} : vector<2x8x40xf32> to vector<2x1x20xf32>
    %164 = vector.shape_cast %163 : vector<2x1x20xf32> to vector<2x20xf32>
    %165 = arith.negf %164 : vector<2x20xf32>
    %166 = math.exp %165 : vector<2x20xf32>
    %cst_26 = arith.constant 1.000000e+00 : f32
    %167 = vector.broadcast %cst_26 : f32 to vector<2x20xf32>
    %168 = arith.addf %167, %166 : vector<2x20xf32>
    %169 = arith.divf %167, %168 : vector<2x20xf32>
    %170 = math.tanh %164 : vector<2x20xf32>
    %171 = vector.extract_strided_slice %169 {offsets = [0, 0], sizes = [2, 5], strides = [1, 1]} : vector<2x20xf32> to vector<2x5xf32>
    %172 = vector.extract_strided_slice %170 {offsets = [0, 10], sizes = [2, 5], strides = [1, 1]} : vector<2x20xf32> to vector<2x5xf32>
    %173 = vector.extract_strided_slice %169 {offsets = [0, 15], sizes = [2, 5], strides = [1, 1]} : vector<2x20xf32> to vector<2x5xf32>
    %174 = arith.mulf %171, %172 : vector<2x5xf32>
    %175 = math.tanh %174 : vector<2x5xf32>
    %176 = arith.mulf %173, %175 : vector<2x5xf32>
    %177 = tpu.concatenate %162, %176 in 1 : vector<2x5xf32>, vector<2x5xf32> -> vector<2x10xf32>
    %c0_27 = arith.constant 0 : index
    %c0_28 = arith.constant 0 : index
    %178 = vector.load %arg4[%c0_27, %c0_28] : memref<10x27xf32, #tpu.memory_space<vmem>>, vector<10x27xf32>
    %cst_29 = arith.constant dense<0.000000e+00> : vector<2x27xf32>
    %179 = tpu.matmul %177, %178, %cst_29 {dimension_numbers = #tpu.dot_dimension_numbers<[1], [0], [0], [1], [0, 0, 1, 1], [], []>} : vector<2x10xf32>, vector<10x27xf32>, vector<2x27xf32> -> vector<2x27xf32>
    %c0_30 = arith.constant 0 : index
    %c0_31 = arith.constant 0 : index
    %180 = vector.load %arg5[%c0_30, %c0_31] : memref<1x27xf32, #tpu.memory_space<vmem>>, vector<1x27xf32>
    %181 = vector.broadcast %180 : vector<1x27xf32> to vector<2x27xf32>
    %182 = arith.addf %179, %181 : vector<2x27xf32>
    %c0_32 = arith.constant 0 : index
    %c0_33 = arith.constant 0 : index
    %183 = vector.load %arg6[%c0_32, %c0_33] : memref<2x27xf32, #tpu.memory_space<vmem>>, vector<2x27xf32>
    tpu.vector_store %arg6[%c0_32, %c0_33], %182 {strides = array<i32>} : memref<2x27xf32, #tpu.memory_space<vmem>>, vector<2x27xf32>,
    return
  }
}

</mosaic_0001>

<llo_original>
// kernel: tpu_custom_call.1
$region0: #{tpu_custom_call.1}
  #allocation0 [shape = 'u32[]', space=smem, size = 0x4, offset = 0x4, fixed_abs, tag = 'smem constant byte address 0x4 - core index']
  #allocation1 [shape = 'u32[144,128]{1,0:T(1,128)}', space=vmem, size = 0x12000, scoped, tag = 'internal scratch']
  %s0 = inlined_call_operand.hbm [shape: f32[2,8,27], index: 0, kind: input, shape index: {}]
  %s1 = inlined_call_operand.hbm [shape: f32[27,40], index: 1, kind: input, shape index: {}]
  %s2 = inlined_call_operand.vmem [shape: f32[1,40], index: 2, kind: input, shape index: {}]
  %s3 = inlined_call_operand.hbm [shape: f32[5,20], index: 3, kind: input, shape index: {}]
  %s4 = inlined_call_operand.hbm [shape: f32[10,27], index: 4, kind: input, shape index: {}]
  %s5 = inlined_call_operand.vmem [shape: f32[1,27], index: 5, kind: input, shape index: {}]
  %s6 = inlined_call_operand.hbm [shape: f32[2,27], index: 6, kind: output, shape index: {}]
  %s7 = sld [smem:[#allocation0]]
  $region50: #{tpu_custom_call.1} parent=0
    _
  %s9 = ssub.s32 1, %s7
  %s10 = scalar_select 0, %s9, %s7
  $region1: #{tpu_custom_call.1} parent=0
    #allocation2 [shape = 'u8[8192]{0}', space=vmem, size = 0x2000, scoped, tag = 'input window, operand 0, single buffered']
    #allocation3 [shape = 's32[1]{0}', space=sflag, size = 0x4, scoped, tag = 'scoped memory for tpu_custom_call.1']
    #allocation4 [shape = 's32[1]{0}', space=sflag, size = 0x4, scoped, tag = 'scoped memory for tpu_custom_call.1']
    #allocation5 [shape = 'u8[16384]{0}', space=vmem, size = 0x4000, scoped, tag = 'input window, operand 1, single buffered']
    #allocation6 [shape = 's32[1]{0}', space=sflag, size = 0x4, scoped, tag = 'scoped memory for tpu_custom_call.1']
    #allocation7 [shape = 'u8[4096]{0}', space=vmem, size = 0x1000, scoped, tag = 'input window, operand 3, single buffered']
    #allocation8 [shape = 'u8[8192]{0}', space=vmem, size = 0x2000, scoped, tag = 'input window, operand 4, single buffered']
    #allocation9 [shape = 's32[1]{0}', space=sflag, size = 0x4, scoped, tag = 'scoped memory for tpu_custom_call.1']
    #allocation10 [shape = 'u8[1024]{0}', space=vmem, size = 0x400, scoped, tag = 'output window, operand 0, single buffered']
    %11 = vsyncpa [#allocation3], 0
    %12 = vsyncpa [#allocation6], 0
    %13 = vsyncpa [#allocation9], 0
    %14 = vsyncpa [#allocation4], 0
    // Predicated region
    $region2: #{tpu_custom_call.1} parent=1 // pred_check
      _
    $region3: #{tpu_custom_call.1} parent=1 // pred_check_branch
      %16 = sbr.rel (0) target = $region5
    $region4: #{tpu_custom_call.1} parent=1 // pred_region
      %s18 = ssub.s32 256, 256
      %19 = vsyncadd [#allocation3], %s18
      %s20 = sshll.u32 [#allocation2], 4
      %s21 = int_to_ptr.vmem [resolvable:$true] %s20
      %26 = dma.hbm_to_vmem [thread:$0]  %s0, 256, %s21, [#allocation3], 128, 128, 8
    $region5: #{tpu_custom_call.1} parent=1 // pred_fallthru
      _
    // Predicated region
    $region6: #{tpu_custom_call.1} parent=1 // pred_check
      _
    $region7: #{tpu_custom_call.1} parent=1 // pred_check_branch
      %28 = sbr.rel (0) target = $region9
    $region8: #{tpu_custom_call.1} parent=1 // pred_region
      %s30 = ssub.s32 512, 512
      %31 = vsyncadd [#allocation6], %s30
      %s32 = sshll.u32 [#allocation5], 4
      %s33 = int_to_ptr.vmem [resolvable:$true] %s32
      %38 = dma.hbm_to_vmem [thread:$0]  %s1, 512, %s33, [#allocation6], 128, 128, 8
    $region9: #{tpu_custom_call.1} parent=1 // pred_fallthru
      _
    // Predicated region
    $region10: #{tpu_custom_call.1} parent=1 // pred_check
      _
    $region11: #{tpu_custom_call.1} parent=1 // pred_check_branch
      %40 = sbr.rel (0) target = $region13
    $region12: #{tpu_custom_call.1} parent=1 // pred_region
      _
    $region13: #{tpu_custom_call.1} parent=1 // pred_fallthru
      _
    // Predicated region
    $region14: #{tpu_custom_call.1} parent=1 // pred_check
      _
    $region15: #{tpu_custom_call.1} parent=1 // pred_check_branch
      %42 = sbr.rel (0) target = $region17
    $region16: #{tpu_custom_call.1} parent=1 // pred_region
      %s44 = ssub.s32 128, 128
      %45 = vsyncadd [#allocation6], %s44
      %s47 = sshll.u32 [#allocation7], 4
      %s48 = int_to_ptr.vmem [resolvable:$true] %s47
      %50 = dma.hbm_to_vmem [thread:$0]  %s3, 128, %s48, [#allocation6]
    $region17: #{tpu_custom_call.1} parent=1 // pred_fallthru
      _
    // Predicated region
    $region18: #{tpu_custom_call.1} parent=1 // pred_check
      _
    $region19: #{tpu_custom_call.1} parent=1 // pred_check_branch
      %52 = sbr.rel (0) target = $region21
    $region20: #{tpu_custom_call.1} parent=1 // pred_region
      %s54 = ssub.s32 256, 256
      %55 = vsyncadd [#allocation9], %s54
      %s56 = sshll.u32 [#allocation8], 4
      %s57 = int_to_ptr.vmem [resolvable:$true] %s56
      %62 = dma.hbm_to_vmem [thread:$0]  %s4, 256, %s57, [#allocation9], 128, 128, 8
    $region21: #{tpu_custom_call.1} parent=1 // pred_fallthru
      _
    // Predicated region
    $region22: #{tpu_custom_call.1} parent=1 // pred_check
      _
    $region23: #{tpu_custom_call.1} parent=1 // pred_check_branch
      %64 = sbr.rel (0) target = $region25
    $region24: #{tpu_custom_call.1} parent=1 // pred_region
      _
    $region25: #{tpu_custom_call.1} parent=1 // pred_fallthru
      _
    // Predicated region
    $region26: #{tpu_custom_call.1} parent=1 // pred_check
      _
    $region27: #{tpu_custom_call.1} parent=1 // pred_check_branch
      %66 = sbr.rel (0) target = $region29
    $region28: #{tpu_custom_call.1} parent=1 // pred_region
      %67 = dma.done [#allocation3], 256
    $region29: #{tpu_custom_call.1} parent=1 // pred_fallthru
      _
    // Predicated region
    $region30: #{tpu_custom_call.1} parent=1 // pred_check
      _
    $region31: #{tpu_custom_call.1} parent=1 // pred_check_branch
      %69 = sbr.rel (0) target = $region33
    $region32: #{tpu_custom_call.1} parent=1 // pred_region
      %70 = dma.done [#allocation6], 512
    $region33: #{tpu_custom_call.1} parent=1 // pred_fallthru
      _
    // Predicated region
    $region34: #{tpu_custom_call.1} parent=1 // pred_check
      _
    $region35: #{tpu_custom_call.1} parent=1 // pred_check_branch
      %72 = sbr.rel (0) target = $region37
    $region36: #{tpu_custom_call.1} parent=1 // pred_region
      %73 = dma.done [#allocation6], 128
    $region37: #{tpu_custom_call.1} parent=1 // pred_fallthru
      _
    // Predicated region
    $region38: #{tpu_custom_call.1} parent=1 // pred_check
      _
    $region39: #{tpu_custom_call.1} parent=1 // pred_check_branch
      %75 = sbr.rel (0) target = $region41
    $region40: #{tpu_custom_call.1} parent=1 // pred_region
      %76 = dma.done [#allocation9], 256
    $region41: #{tpu_custom_call.1} parent=1 // pred_fallthru
      _
    %v77 = vld [vmem:[#allocation2] sm:$0xff]
    %v78 = vld [vmem:[#allocation2 + $0x8] sm:$0xff]
    %v79 = vld [vmem:[#allocation5] sm:$0xff]
    %v80 = vld [vmem:[#allocation5 + $0x8] sm:$0xff]
    %v81 = vld [vmem:[#allocation5 + $0x10] sm:$0xff]
    %v82 = vld [vmem:[#allocation5 + $0x18] sm:$0x7]
    %v83 = vld [vmem:[%s2] sm:$0x1]
    %v85 = vlaneseq
    %v86 = vshrl.u32 %v85, 7
    %v87 = vsub.s32 0, %v86
    %v88 = vrot.slane %v83, %v87
    %vm90 = vcmask 220160
    %v92 = vsel %vm90, %v77, 0
    %v95 = vsel %vm90, %v78, 0
    %vm97 = vcmask 1042432
    %v99 = vsel %vm97, %v82, 0
    %101 = vmatprep.subr.mxu0 0.0
    %102 = vmatpush1.msra.mxu0 0.0
    %103 = vmatprep.subr.mxu0 0.0
    %104 = vmatpush1.msra.mxu0 0.0
    %105 = vmatprep.subr.mxu0 0.0
    %106 = vmatpush1.msra.mxu0 0.0
    %107 = vmatprep.subr.mxu0 0.0
    %108 = vmatpush1.msra.mxu0 0.0
    %109 = vmatprep.subr.mxu0 0.0
    %110 = vmatpush1.msra.mxu0 0.0
    %111 = vmatprep.subr.mxu0 0.0
    %112 = vmatpush1.msra.mxu0 0.0
    %113 = vmatprep.subr.mxu0 0.0
    %114 = vmatpush1.msra.mxu0 0.0
    %115 = vmatprep.subr.mxu0 0.0
    %116 = vmatpush1.msra.mxu0 0.0
    %117 = vmatprep.subr.mxu0 0.0
    %118 = vmatpush1.msra.mxu0 0.0
    %119 = vmatprep.subr.mxu0 0.0
    %120 = vmatpush1.msra.mxu0 0.0
    %121 = vmatprep.subr.mxu0 0.0
    %122 = vmatpush1.msra.mxu0 0.0
    %123 = vmatprep.subr.mxu0 0.0
    %124 = vmatpush1.msra.mxu0 0.0
    %125 = vmatprep.subr.mxu0 0.0
    %126 = vmatpush1.msra.mxu0 %v99
    %127 = vmatprep.subr.mxu0 0.0
    %128 = vmatpush1.msra.mxu0 %v81
    %129 = vmatprep.subr.mxu0 0.0
    %130 = vmatpush1.msra.mxu0 %v80
    %131 = vmatprep.subr.mxu0 0.0
    %132 = vmatpush1.msra.mxu0 %v79
    %133 = vmatprep.subr.mxu0 0.0
    %134 = vmatpush2.msra.mxu0 0.0
    %135 = vmatprep.subr.mxu0 0.0
    %136 = vmatpush2.msra.mxu0 0.0
    %137 = vmatprep.subr.mxu0 0.0
    %138 = vmatpush2.msra.mxu0 0.0
    %139 = vmatprep.subr.mxu0 0.0
    %140 = vmatpush2.msra.mxu0 0.0
    %141 = vmatprep.subr.mxu0 0.0
    %142 = vmatpush2.msra.mxu0 0.0
    %143 = vmatprep.subr.mxu0 0.0
    %144 = vmatpush2.msra.mxu0 0.0
    %145 = vmatprep.subr.mxu0 0.0
    %146 = vmatpush2.msra.mxu0 0.0
    %147 = vmatprep.subr.mxu0 0.0
    %148 = vmatpush2.msra.mxu0 0.0
    %149 = vmatprep.subr.mxu0 0.0
    %150 = vmatpush2.msra.mxu0 0.0
    %151 = vmatprep.subr.mxu0 0.0
    %152 = vmatpush2.msra.mxu0 0.0
    %153 = vmatprep.subr.mxu0 0.0
    %154 = vmatpush2.msra.mxu0 0.0
    %155 = vmatprep.subr.mxu0 0.0
    %156 = vmatpush2.msra.mxu0 0.0
    %157 = vmatprep.subr.mxu0 0.0
    %158 = vmatpush2.msra.mxu0 0.0
    %159 = vmatprep.subr.mxu0 0.0
    %160 = vmatpush2.msra.mxu0 0.0
    %161 = vmatprep.subr.mxu0 0.0
    %162 = vmatpush2.msra.mxu0 0.0
    %163 = vmatprep.subr.mxu0 0.0
    %164 = vmatpush2.msra.mxu0 0.0
    %165 = vmatprep.mubr.f32.mxu0 0.0
    %166 = vmatmul.mubr.f32.gmra.mxu0 %v92
    %v167 = vpop.f32.mrf.mxu0
    %v168 = vadd.f32 %v88, %v167
    %v169 = vpop.f32.mrf.mxu0
    %170 = vmatprep.mubr.f32.mxu0 0.0
    %171 = vmatmul.mubr.f32.gmra.mxu0 %v95
    %v172 = vpop.f32.mrf.mxu0
    %v173 = vadd.f32 %v88, %v172
    %v174 = vpop.f32.mrf.mxu0
    %175 = vdwg.mxu0
    %v176 = vld [vmem:[#allocation7] sm:$0x1f]
    %vm177 = vcmask 39936
    %v179 = vsel %vm177, 0.0, 0
    %vm181 = vcmask 1044480
    %v183 = vsel %vm181, %v176, 0
    %185 = vmatprep.subr.mxu0 0.0
    %186 = vmatpush1.msra.mxu0 0.0
    %187 = vmatprep.subr.mxu0 0.0
    %188 = vmatpush1.msra.mxu0 0.0
    %189 = vmatprep.subr.mxu0 0.0
    %190 = vmatpush1.msra.mxu0 0.0
    %191 = vmatprep.subr.mxu0 0.0
    %192 = vmatpush1.msra.mxu0 0.0
    %193 = vmatprep.subr.mxu0 0.0
    %194 = vmatpush1.msra.mxu0 0.0
    %195 = vmatprep.subr.mxu0 0.0
    %196 = vmatpush1.msra.mxu0 0.0
    %197 = vmatprep.subr.mxu0 0.0
    %198 = vmatpush1.msra.mxu0 0.0
    %199 = vmatprep.subr.mxu0 0.0
    %200 = vmatpush1.msra.mxu0 0.0
    %201 = vmatprep.subr.mxu0 0.0
    %202 = vmatpush1.msra.mxu0 0.0
    %203 = vmatprep.subr.mxu0 0.0
    %204 = vmatpush1.msra.mxu0 0.0
    %205 = vmatprep.subr.mxu0 0.0
    %206 = vmatpush1.msra.mxu0 0.0
    %207 = vmatprep.subr.mxu0 0.0
    %208 = vmatpush1.msra.mxu0 0.0
    %209 = vmatprep.subr.mxu0 0.0
    %210 = vmatpush1.msra.mxu0 0.0
    %211 = vmatprep.subr.mxu0 0.0
    %212 = vmatpush1.msra.mxu0 0.0
    %213 = vmatprep.subr.mxu0 0.0
    %214 = vmatpush1.msra.mxu0 0.0
    %215 = vmatprep.subr.mxu0 0.0
    %216 = vmatpush1.msra.mxu0 %v183
    %217 = vmatprep.subr.mxu0 0.0
    %218 = vmatpush2.msra.mxu0 0.0
    %219 = vmatprep.subr.mxu0 0.0
    %220 = vmatpush2.msra.mxu0 0.0
    %221 = vmatprep.subr.mxu0 0.0
    %222 = vmatpush2.msra.mxu0 0.0
    %223 = vmatprep.subr.mxu0 0.0
    %224 = vmatpush2.msra.mxu0 0.0
    %225 = vmatprep.subr.mxu0 0.0
    %226 = vmatpush2.msra.mxu0 0.0
    %227 = vmatprep.subr.mxu0 0.0
    %228 = vmatpush2.msra.mxu0 0.0
    %229 = vmatprep.subr.mxu0 0.0
    %230 = vmatpush2.msra.mxu0 0.0
    %231 = vmatprep.subr.mxu0 0.0
    %232 = vmatpush2.msra.mxu0 0.0
    %233 = vmatprep.subr.mxu0 0.0
    %234 = vmatpush2.msra.mxu0 0.0
    %235 = vmatprep.subr.mxu0 0.0
    %236 = vmatpush2.msra.mxu0 0.0
    %237 = vmatprep.subr.mxu0 0.0
    %238 = vmatpush2.msra.mxu0 0.0
    %239 = vmatprep.subr.mxu0 0.0
    %240 = vmatpush2.msra.mxu0 0.0
    %241 = vmatprep.subr.mxu0 0.0
    %242 = vmatpush2.msra.mxu0 0.0
    %243 = vmatprep.subr.mxu0 0.0
    %244 = vmatpush2.msra.mxu0 0.0
    %245 = vmatprep.subr.mxu0 0.0
    %246 = vmatpush2.msra.mxu0 0.0
    %247 = vmatprep.subr.mxu0 0.0
    %248 = vmatpush2.msra.mxu0 0.0
    %249 = vmatprep.mubr.f32.mxu0 0.0
    %250 = vmatmul.mubr.f32.gmra.mxu0 %v179
    %v251 = vpop.f32.mrf.mxu0
    %v252 = vadd.f32 0.0, %v251
    %v253 = vpop.f32.mrf.mxu0
    %254 = vdwg.mxu0
    %v256 = vrot.slane %v252, 1
    %v259 = vadd.f32 %v168, %v252
    %v260 = vadd.f32 %v173, %v256
    %v261 = vxor.u32 %v259, 2147483648
    %v262 = vxor.u32 %v260, 2147483648
    %v263 = vmul.f32 %v261, 1.442695
    %v264 = vpow.pop %v263
    %v265 = vmul.f32 %v262, 1.442695
    %v266 = vpow.pop %v265
    %v267 = vadd.f32 %v264, 1.0
    %v268 = vadd.f32 %v266, 1.0
    %v269 = vrcp.pop %v267
    %v270 = vmul.f32 1.0, %v269
    %v271 = vrcp.pop %v268
    %v272 = vmul.f32 1.0, %v271
    %v273 = vtanh.pop %v259
    %v274 = vtanh.pop %v260
    %v275 = vmul.f32 %v270, 0.0
    %v276 = vmul.f32 %v272, 0.0
    %279 = vrot.lane.b32.xlu0 %v273, 118
    %v280 = vpop.permute.xlu0 %279
    %281 = vrot.lane.b32.xlu0 %v274, 118
    %v282 = vpop.permute.xlu0 %281
    %v285 = vmul.f32 %v270, %v280
    %v286 = vmul.f32 %v272, %v282
    %289 = vrot.lane.b32.xlu0 %v285, 5
    %v290 = vpop.permute.xlu0 %289
    %291 = vrot.lane.b32.xlu0 %v286, 5
    %v292 = vpop.permute.xlu0 %291
    %v295 = vadd.f32 %v275, %v290
    %v296 = vadd.f32 %v276, %v292
    %v297 = vtanh.pop %v295
    %v298 = vtanh.pop %v296
    %301 = vrot.lane.b32.xlu0 %v297, 10
    %v302 = vpop.permute.xlu0 %301
    %303 = vrot.lane.b32.xlu0 %v298, 10
    %v304 = vpop.permute.xlu0 %303
    %v307 = vmul.f32 %v270, %v302
    %v308 = vmul.f32 %v272, %v304
    %v311 = vrot.slane %v308, 7
    %vm312 = vcmask 1041409
    %v313 = vsel %vm312, %v311, %v307
    %314 = vrot.lane.b32.xlu0 %v313, 113
    %v315 = vpop.permute.xlu0 %314
    %v316 = vsel %vm177, %v315, 0
    %318 = vmatprep.subr.mxu0 0.0
    %319 = vmatpush1.msra.mxu0 0.0
    %320 = vmatprep.subr.mxu0 0.0
    %321 = vmatpush1.msra.mxu0 0.0
    %322 = vmatprep.subr.mxu0 0.0
    %323 = vmatpush1.msra.mxu0 0.0
    %324 = vmatprep.subr.mxu0 0.0
    %325 = vmatpush1.msra.mxu0 0.0
    %326 = vmatprep.subr.mxu0 0.0
    %327 = vmatpush1.msra.mxu0 0.0
    %328 = vmatprep.subr.mxu0 0.0
    %329 = vmatpush1.msra.mxu0 0.0
    %330 = vmatprep.subr.mxu0 0.0
    %331 = vmatpush1.msra.mxu0 0.0
    %332 = vmatprep.subr.mxu0 0.0
    %333 = vmatpush1.msra.mxu0 0.0
    %334 = vmatprep.subr.mxu0 0.0
    %335 = vmatpush1.msra.mxu0 0.0
    %336 = vmatprep.subr.mxu0 0.0
    %337 = vmatpush1.msra.mxu0 0.0
    %338 = vmatprep.subr.mxu0 0.0
    %339 = vmatpush1.msra.mxu0 0.0
    %340 = vmatprep.subr.mxu0 0.0
    %341 = vmatpush1.msra.mxu0 0.0
    %342 = vmatprep.subr.mxu0 0.0
    %343 = vmatpush1.msra.mxu0 0.0
    %344 = vmatprep.subr.mxu0 0.0
    %345 = vmatpush1.msra.mxu0 0.0
    %346 = vmatprep.subr.mxu0 0.0
    %347 = vmatpush1.msra.mxu0 0.0
    %348 = vmatprep.subr.mxu0 0.0
    %349 = vmatpush1.msra.mxu0 %v183
    %350 = vmatprep.subr.mxu0 0.0
    %351 = vmatpush2.msra.mxu0 0.0
    %352 = vmatprep.subr.mxu0 0.0
    %353 = vmatpush2.msra.mxu0 0.0
    %354 = vmatprep.subr.mxu0 0.0
    %355 = vmatpush2.msra.mxu0 0.0
    %356 = vmatprep.subr.mxu0 0.0
    %357 = vmatpush2.msra.mxu0 0.0
    %358 = vmatprep.subr.mxu0 0.0
    %359 = vmatpush2.msra.mxu0 0.0
    %360 = vmatprep.subr.mxu0 0.0
    %361 = vmatpush2.msra.mxu0 0.0
    %362 = vmatprep.subr.mxu0 0.0
    %363 = vmatpush2.msra.mxu0 0.0
    %364 = vmatprep.subr.mxu0 0.0
    %365 = vmatpush2.msra.mxu0 0.0
    %366 = vmatprep.subr.mxu0 0.0
    %367 = vmatpush2.msra.mxu0 0.0
    %368 = vmatprep.subr.mxu0 0.0
    %369 = vmatpush2.msra.mxu0 0.0
    %370 = vmatprep.subr.mxu0 0.0
    %371 = vmatpush2.msra.mxu0 0.0
    %372 = vmatprep.subr.mxu0 0.0
    %373 = vmatpush2.msra.mxu0 0.0
    %374 = vmatprep.subr.mxu0 0.0
    %375 = vmatpush2.msra.mxu0 0.0
    %376 = vmatprep.subr.mxu0 0.0
    %377 = vmatpush2.msra.mxu0 0.0
    %378 = vmatprep.subr.mxu0 0.0
    %379 = vmatpush2.msra.mxu0 0.0
    %380 = vmatprep.subr.mxu0 0.0
    %381 = vmatpush2.msra.mxu0 0.0
    %382 = vmatprep.mubr.f32.mxu0 0.0
    %383 = vmatmul.mubr.f32.gmra.mxu0 %v316
    %v384 = vpop.f32.mrf.mxu0
    %v385 = vadd.f32 0.0, %v384
    %v386 = vpop.f32.mrf.mxu0
    %387 = vdwg.mxu0
    %v389 = vrot.slane %v385, 7
    %v392 = vadd.f32 %v168, %v389
    %v393 = vadd.f32 %v173, %v385
    %v394 = vxor.u32 %v392, 2147483648
    %v395 = vxor.u32 %v393, 2147483648
    %v396 = vmul.f32 %v394, 1.442695
    %v397 = vpow.pop %v396
    %v398 = vmul.f32 %v395, 1.442695
    %v399 = vpow.pop %v398
    %v400 = vadd.f32 %v397, 1.0
    %v401 = vadd.f32 %v399, 1.0
    %v402 = vrcp.pop %v400
    %v403 = vmul.f32 1.0, %v402
    %v404 = vrcp.pop %v401
    %v405 = vmul.f32 1.0, %v404
    %v406 = vtanh.pop %v392
    %v407 = vtanh.pop %v393
    %v410 = vrot.slane %v295, 7
    %v411 = vrot.slane %v296, 7
    %v414 = vmul.f32 %v403, %v410
    %v415 = vmul.f32 %v405, %v411
    %418 = vrot.lane.b32.xlu0 %v406, 118
    %v419 = vpop.permute.xlu0 %418
    %420 = vrot.lane.b32.xlu0 %v407, 118
    %v421 = vpop.permute.xlu0 %420
    %v424 = vmul.f32 %v403, %v419
    %v425 = vmul.f32 %v405, %v421
    %428 = vrot.lane.b32.xlu0 %v424, 5
    %v429 = vpop.permute.xlu0 %428
    %430 = vrot.lane.b32.xlu0 %v425, 5
    %v431 = vpop.permute.xlu0 %430
    %v434 = vadd.f32 %v414, %v429
    %v435 = vadd.f32 %v415, %v431
    %v436 = vtanh.pop %v434
    %v437 = vtanh.pop %v435
    %440 = vrot.lane.b32.xlu0 %v436, 10
    %v441 = vpop.permute.xlu0 %440
    %442 = vrot.lane.b32.xlu0 %v437, 10
    %v443 = vpop.permute.xlu0 %442
    %v446 = vmul.f32 %v403, %v441
    %v447 = vmul.f32 %v405, %v443
    %v450 = vrot.slane %v446, 1
    %v451 = vsel %vm312, %v447, %v450
    %452 = vrot.lane.b32.xlu0 %v451, 113
    %v453 = vpop.permute.xlu0 %452
    %v454 = vsel %vm177, %v453, 0
    %456 = vmatprep.subr.mxu0 0.0
    %457 = vmatpush1.msra.mxu0 0.0
    %458 = vmatprep.subr.mxu0 0.0
    %459 = vmatpush1.msra.mxu0 0.0
    %460 = vmatprep.subr.mxu0 0.0
    %461 = vmatpush1.msra.mxu0 0.0
    %462 = vmatprep.subr.mxu0 0.0
    %463 = vmatpush1.msra.mxu0 0.0
    %464 = vmatprep.subr.mxu0 0.0
    %465 = vmatpush1.msra.mxu0 0.0
    %466 = vmatprep.subr.mxu0 0.0
    %467 = vmatpush1.msra.mxu0 0.0
    %468 = vmatprep.subr.mxu0 0.0
    %469 = vmatpush1.msra.mxu0 0.0
    %470 = vmatprep.subr.mxu0 0.0
    %471 = vmatpush1.msra.mxu0 0.0
    %472 = vmatprep.subr.mxu0 0.0
    %473 = vmatpush1.msra.mxu0 0.0
    %474 = vmatprep.subr.mxu0 0.0
    %475 = vmatpush1.msra.mxu0 0.0
    %476 = vmatprep.subr.mxu0 0.0
    %477 = vmatpush1.msra.mxu0 0.0
    %478 = vmatprep.subr.mxu0 0.0
    %479 = vmatpush1.msra.mxu0 0.0
    %480 = vmatprep.subr.mxu0 0.0
    %481 = vmatpush1.msra.mxu0 0.0
    %482 = vmatprep.subr.mxu0 0.0
    %483 = vmatpush1.msra.mxu0 0.0
    %484 = vmatprep.subr.mxu0 0.0
    %485 = vmatpush1.msra.mxu0 0.0
    %486 = vmatprep.subr.mxu0 0.0
    %487 = vmatpush1.msra.mxu0 %v183
    %488 = vmatprep.subr.mxu0 0.0
    %489 = vmatpush2.msra.mxu0 0.0
    %490 = vmatprep.subr.mxu0 0.0
    %491 = vmatpush2.msra.mxu0 0.0
    %492 = vmatprep.subr.mxu0 0.0
    %493 = vmatpush2.msra.mxu0 0.0
    %494 = vmatprep.subr.mxu0 0.0
    %495 = vmatpush2.msra.mxu0 0.0
    %496 = vmatprep.subr.mxu0 0.0
    %497 = vmatpush2.msra.mxu0 0.0
    %498 = vmatprep.subr.mxu0 0.0
    %499 = vmatpush2.msra.mxu0 0.0
    %500 = vmatprep.subr.mxu0 0.0
    %501 = vmatpush2.msra.mxu0 0.0
    %502 = vmatprep.subr.mxu0 0.0
    %503 = vmatpush2.msra.mxu0 0.0
    %504 = vmatprep.subr.mxu0 0.0
    %505 = vmatpush2.msra.mxu0 0.0
    %506 = vmatprep.subr.mxu0 0.0
    %507 = vmatpush2.msra.mxu0 0.0
    %508 = vmatprep.subr.mxu0 0.0
    %509 = vmatpush2.msra.mxu0 0.0
    %510 = vmatprep.subr.mxu0 0.0
    %511 = vmatpush2.msra.mxu0 0.0
    %512 = vmatprep.subr.mxu0 0.0
    %513 = vmatpush2.msra.mxu0 0.0
    %514 = vmatprep.subr.mxu0 0.0
    %515 = vmatpush2.msra.mxu0 0.0
    %516 = vmatprep.subr.mxu0 0.0
    %517 = vmatpush2.msra.mxu0 0.0
    %518 = vmatprep.subr.mxu0 0.0
    %519 = vmatpush2.msra.mxu0 0.0
    %520 = vmatprep.mubr.f32.mxu0 0.0
    %521 = vmatmul.mubr.f32.gmra.mxu0 %v454
    %v522 = vpop.f32.mrf.mxu0
    %v523 = vadd.f32 0.0, %v522
    %v524 = vpop.f32.mrf.mxu0
    %525 = vdwg.mxu0
    %v527 = vrot.slane %v523, 6
    %v528 = vrot.slane %v523, 7
    %v531 = vadd.f32 %v168, %v527
    %v532 = vadd.f32 %v173, %v528
    %v533 = vxor.u32 %v531, 2147483648
    %v534 = vxor.u32 %v532, 2147483648
    %v535 = vmul.f32 %v533, 1.442695
    %v536 = vpow.pop %v535
    %v537 = vmul.f32 %v534, 1.442695
    %v538 = vpow.pop %v537
    %v539 = vadd.f32 %v536, 1.0
    %v540 = vadd.f32 %v538, 1.0
    %v541 = vrcp.pop %v539
    %v542 = vmul.f32 1.0, %v541
    %v543 = vrcp.pop %v540
    %v544 = vmul.f32 1.0, %v543
    %v545 = vtanh.pop %v531
    %v546 = vtanh.pop %v532
    %v549 = vrot.slane %v434, 7
    %v550 = vrot.slane %v435, 7
    %v553 = vmul.f32 %v542, %v549
    %v554 = vmul.f32 %v544, %v550
    %557 = vrot.lane.b32.xlu0 %v545, 118
    %v558 = vpop.permute.xlu0 %557
    %559 = vrot.lane.b32.xlu0 %v546, 118
    %v560 = vpop.permute.xlu0 %559
    %v563 = vmul.f32 %v542, %v558
    %v564 = vmul.f32 %v544, %v560
    %567 = vrot.lane.b32.xlu0 %v563, 5
    %v568 = vpop.permute.xlu0 %567
    %569 = vrot.lane.b32.xlu0 %v564, 5
    %v570 = vpop.permute.xlu0 %569
    %v573 = vadd.f32 %v553, %v568
    %v574 = vadd.f32 %v554, %v570
    %v575 = vtanh.pop %v573
    %v576 = vtanh.pop %v574
    %579 = vrot.lane.b32.xlu0 %v575, 10
    %v580 = vpop.permute.xlu0 %579
    %581 = vrot.lane.b32.xlu0 %v576, 10
    %v582 = vpop.permute.xlu0 %581
    %v585 = vmul.f32 %v542, %v580
    %v586 = vmul.f32 %v544, %v582
    %v589 = vrot.slane %v585, 2
    %v590 = vrot.slane %v586, 1
    %v591 = vsel %vm312, %v590, %v589
    %592 = vrot.lane.b32.xlu0 %v591, 113
    %v593 = vpop.permute.xlu0 %592
    %v594 = vsel %vm177, %v593, 0
    %596 = vmatprep.subr.mxu0 0.0
    %597 = vmatpush1.msra.mxu0 0.0
    %598 = vmatprep.subr.mxu0 0.0
    %599 = vmatpush1.msra.mxu0 0.0
    %600 = vmatprep.subr.mxu0 0.0
    %601 = vmatpush1.msra.mxu0 0.0
    %602 = vmatprep.subr.mxu0 0.0
    %603 = vmatpush1.msra.mxu0 0.0
    %604 = vmatprep.subr.mxu0 0.0
    %605 = vmatpush1.msra.mxu0 0.0
    %606 = vmatprep.subr.mxu0 0.0
    %607 = vmatpush1.msra.mxu0 0.0
    %608 = vmatprep.subr.mxu0 0.0
    %609 = vmatpush1.msra.mxu0 0.0
    %610 = vmatprep.subr.mxu0 0.0
    %611 = vmatpush1.msra.mxu0 0.0
    %612 = vmatprep.subr.mxu0 0.0
    %613 = vmatpush1.msra.mxu0 0.0
    %614 = vmatprep.subr.mxu0 0.0
    %615 = vmatpush1.msra.mxu0 0.0
    %616 = vmatprep.subr.mxu0 0.0
    %617 = vmatpush1.msra.mxu0 0.0
    %618 = vmatprep.subr.mxu0 0.0
    %619 = vmatpush1.msra.mxu0 0.0
    %620 = vmatprep.subr.mxu0 0.0
    %621 = vmatpush1.msra.mxu0 0.0
    %622 = vmatprep.subr.mxu0 0.0
    %623 = vmatpush1.msra.mxu0 0.0
    %624 = vmatprep.subr.mxu0 0.0
    %625 = vmatpush1.msra.mxu0 0.0
    %626 = vmatprep.subr.mxu0 0.0
    %627 = vmatpush1.msra.mxu0 %v183
    %628 = vmatprep.subr.mxu0 0.0
    %629 = vmatpush2.msra.mxu0 0.0
    %630 = vmatprep.subr.mxu0 0.0
    %631 = vmatpush2.msra.mxu0 0.0
    %632 = vmatprep.subr.mxu0 0.0
    %633 = vmatpush2.msra.mxu0 0.0
    %634 = vmatprep.subr.mxu0 0.0
    %635 = vmatpush2.msra.mxu0 0.0
    %636 = vmatprep.subr.mxu0 0.0
    %637 = vmatpush2.msra.mxu0 0.0
    %638 = vmatprep.subr.mxu0 0.0
    %639 = vmatpush2.msra.mxu0 0.0
    %640 = vmatprep.subr.mxu0 0.0
    %641 = vmatpush2.msra.mxu0 0.0
    %642 = vmatprep.subr.mxu0 0.0
    %643 = vmatpush2.msra.mxu0 0.0
    %644 = vmatprep.subr.mxu0 0.0
    %645 = vmatpush2.msra.mxu0 0.0
    %646 = vmatprep.subr.mxu0 0.0
    %647 = vmatpush2.msra.mxu0 0.0
    %648 = vmatprep.subr.mxu0 0.0
    %649 = vmatpush2.msra.mxu0 0.0
    %650 = vmatprep.subr.mxu0 0.0
    %651 = vmatpush2.msra.mxu0 0.0
    %652 = vmatprep.subr.mxu0 0.0
    %653 = vmatpush2.msra.mxu0 0.0
    %654 = vmatprep.subr.mxu0 0.0
    %655 = vmatpush2.msra.mxu0 0.0
    %656 = vmatprep.subr.mxu0 0.0
    %657 = vmatpush2.msra.mxu0 0.0
    %658 = vmatprep.subr.mxu0 0.0
    %659 = vmatpush2.msra.mxu0 0.0
    %660 = vmatprep.mubr.f32.mxu0 0.0
    %661 = vmatmul.mubr.f32.gmra.mxu0 %v594
    %v662 = vpop.f32.mrf.mxu0
    %v663 = vadd.f32 0.0, %v662
    %v664 = vpop.f32.mrf.mxu0
    %665 = vdwg.mxu0
    %v667 = vrot.slane %v663, 5
    %v668 = vrot.slane %v663, 6
    %v671 = vadd.f32 %v168, %v667
    %v672 = vadd.f32 %v173, %v668
    %v673 = vxor.u32 %v671, 2147483648
    %v674 = vxor.u32 %v672, 2147483648
    %v675 = vmul.f32 %v673, 1.442695
    %v676 = vpow.pop %v675
    %v677 = vmul.f32 %v674, 1.442695
    %v678 = vpow.pop %v677
    %v679 = vadd.f32 %v676, 1.0
    %v680 = vadd.f32 %v678, 1.0
    %v681 = vrcp.pop %v679
    %v682 = vmul.f32 1.0, %v681
    %v683 = vrcp.pop %v680
    %v684 = vmul.f32 1.0, %v683
    %v685 = vtanh.pop %v671
    %v686 = vtanh.pop %v672
    %v689 = vrot.slane %v573, 7
    %v690 = vrot.slane %v574, 7
    %v693 = vmul.f32 %v682, %v689
    %v694 = vmul.f32 %v684, %v690
    %697 = vrot.lane.b32.xlu0 %v685, 118
    %v698 = vpop.permute.xlu0 %697
    %699 = vrot.lane.b32.xlu0 %v686, 118
    %v700 = vpop.permute.xlu0 %699
    %v703 = vmul.f32 %v682, %v698
    %v704 = vmul.f32 %v684, %v700
    %707 = vrot.lane.b32.xlu0 %v703, 5
    %v708 = vpop.permute.xlu0 %707
    %709 = vrot.lane.b32.xlu0 %v704, 5
    %v710 = vpop.permute.xlu0 %709
    %v713 = vadd.f32 %v693, %v708
    %v714 = vadd.f32 %v694, %v710
    %v715 = vtanh.pop %v713
    %v716 = vtanh.pop %v714
    %719 = vrot.lane.b32.xlu0 %v715, 10
    %v720 = vpop.permute.xlu0 %719
    %721 = vrot.lane.b32.xlu0 %v716, 10
    %v722 = vpop.permute.xlu0 %721
    %v725 = vmul.f32 %v682, %v720
    %v726 = vmul.f32 %v684, %v722
    %v729 = vrot.slane %v725, 3
    %v730 = vrot.slane %v726, 2
    %v731 = vsel %vm312, %v730, %v729
    %732 = vrot.lane.b32.xlu0 %v731, 113
    %v733 = vpop.permute.xlu0 %732
    %v734 = vsel %vm177, %v733, 0
    %736 = vmatprep.subr.mxu0 0.0
    %737 = vmatpush1.msra.mxu0 0.0
    %738 = vmatprep.subr.mxu0 0.0
    %739 = vmatpush1.msra.mxu0 0.0
    %740 = vmatprep.subr.mxu0 0.0
    %741 = vmatpush1.msra.mxu0 0.0
    %742 = vmatprep.subr.mxu0 0.0
    %743 = vmatpush1.msra.mxu0 0.0
    %744 = vmatprep.subr.mxu0 0.0
    %745 = vmatpush1.msra.mxu0 0.0
    %746 = vmatprep.subr.mxu0 0.0
    %747 = vmatpush1.msra.mxu0 0.0
    %748 = vmatprep.subr.mxu0 0.0
    %749 = vmatpush1.msra.mxu0 0.0
    %750 = vmatprep.subr.mxu0 0.0
    %751 = vmatpush1.msra.mxu0 0.0
    %752 = vmatprep.subr.mxu0 0.0
    %753 = vmatpush1.msra.mxu0 0.0
    %754 = vmatprep.subr.mxu0 0.0
    %755 = vmatpush1.msra.mxu0 0.0
    %756 = vmatprep.subr.mxu0 0.0
    %757 = vmatpush1.msra.mxu0 0.0
    %758 = vmatprep.subr.mxu0 0.0
    %759 = vmatpush1.msra.mxu0 0.0
    %760 = vmatprep.subr.mxu0 0.0
    %761 = vmatpush1.msra.mxu0 0.0
    %762 = vmatprep.subr.mxu0 0.0
    %763 = vmatpush1.msra.mxu0 0.0
    %764 = vmatprep.subr.mxu0 0.0
    %765 = vmatpush1.msra.mxu0 0.0
    %766 = vmatprep.subr.mxu0 0.0
    %767 = vmatpush1.msra.mxu0 %v183
    %768 = vmatprep.subr.mxu0 0.0
    %769 = vmatpush2.msra.mxu0 0.0
    %770 = vmatprep.subr.mxu0 0.0
    %771 = vmatpush2.msra.mxu0 0.0
    %772 = vmatprep.subr.mxu0 0.0
    %773 = vmatpush2.msra.mxu0 0.0
    %774 = vmatprep.subr.mxu0 0.0
    %775 = vmatpush2.msra.mxu0 0.0
    %776 = vmatprep.subr.mxu0 0.0
    %777 = vmatpush2.msra.mxu0 0.0
    %778 = vmatprep.subr.mxu0 0.0
    %779 = vmatpush2.msra.mxu0 0.0
    %780 = vmatprep.subr.mxu0 0.0
    %781 = vmatpush2.msra.mxu0 0.0
    %782 = vmatprep.subr.mxu0 0.0
    %783 = vmatpush2.msra.mxu0 0.0
    %784 = vmatprep.subr.mxu0 0.0
    %785 = vmatpush2.msra.mxu0 0.0
    %786 = vmatprep.subr.mxu0 0.0
    %787 = vmatpush2.msra.mxu0 0.0
    %788 = vmatprep.subr.mxu0 0.0
    %789 = vmatpush2.msra.mxu0 0.0
    %790 = vmatprep.subr.mxu0 0.0
    %791 = vmatpush2.msra.mxu0 0.0
    %792 = vmatprep.subr.mxu0 0.0
    %793 = vmatpush2.msra.mxu0 0.0
    %794 = vmatprep.subr.mxu0 0.0
    %795 = vmatpush2.msra.mxu0 0.0
    %796 = vmatprep.subr.mxu0 0.0
    %797 = vmatpush2.msra.mxu0 0.0
    %798 = vmatprep.subr.mxu0 0.0
    %799 = vmatpush2.msra.mxu0 0.0
    %800 = vmatprep.mubr.f32.mxu0 0.0
    %801 = vmatmul.mubr.f32.gmra.mxu0 %v734
    %v802 = vpop.f32.mrf.mxu0
    %v803 = vadd.f32 0.0, %v802
    %v804 = vpop.f32.mrf.mxu0
    %805 = vdwg.mxu0
    %v807 = vrot.slane %v803, 4
    %v808 = vrot.slane %v803, 5
    %v811 = vadd.f32 %v168, %v807
    %v812 = vadd.f32 %v173, %v808
    %v813 = vxor.u32 %v811, 2147483648
    %v814 = vxor.u32 %v812, 2147483648
    %v815 = vmul.f32 %v813, 1.442695
    %v816 = vpow.pop %v815
    %v817 = vmul.f32 %v814, 1.442695
    %v818 = vpow.pop %v817
    %v819 = vadd.f32 %v816, 1.0
    %v820 = vadd.f32 %v818, 1.0
    %v821 = vrcp.pop %v819
    %v822 = vmul.f32 1.0, %v821
    %v823 = vrcp.pop %v820
    %v824 = vmul.f32 1.0, %v823
    %v825 = vtanh.pop %v811
    %v826 = vtanh.pop %v812
    %v829 = vrot.slane %v713, 7
    %v830 = vrot.slane %v714, 7
    %v833 = vmul.f32 %v822, %v829
    %v834 = vmul.f32 %v824, %v830
    %837 = vrot.lane.b32.xlu0 %v825, 118
    %v838 = vpop.permute.xlu0 %837
    %839 = vrot.lane.b32.xlu0 %v826, 118
    %v840 = vpop.permute.xlu0 %839
    %v843 = vmul.f32 %v822, %v838
    %v844 = vmul.f32 %v824, %v840
    %847 = vrot.lane.b32.xlu0 %v843, 5
    %v848 = vpop.permute.xlu0 %847
    %849 = vrot.lane.b32.xlu0 %v844, 5
    %v850 = vpop.permute.xlu0 %849
    %v853 = vadd.f32 %v833, %v848
    %v854 = vadd.f32 %v834, %v850
    %v855 = vtanh.pop %v853
    %v856 = vtanh.pop %v854
    %859 = vrot.lane.b32.xlu0 %v855, 10
    %v860 = vpop.permute.xlu0 %859
    %861 = vrot.lane.b32.xlu0 %v856, 10
    %v862 = vpop.permute.xlu0 %861
    %v865 = vmul.f32 %v822, %v860
    %v866 = vmul.f32 %v824, %v862
    %v869 = vrot.slane %v865, 4
    %v870 = vrot.slane %v866, 3
    %v871 = vsel %vm312, %v870, %v869
    %872 = vrot.lane.b32.xlu0 %v871, 113
    %v873 = vpop.permute.xlu0 %872
    %v874 = vsel %vm177, %v873, 0
    %876 = vmatprep.subr.mxu0 0.0
    %877 = vmatpush1.msra.mxu0 0.0
    %878 = vmatprep.subr.mxu0 0.0
    %879 = vmatpush1.msra.mxu0 0.0
    %880 = vmatprep.subr.mxu0 0.0
    %881 = vmatpush1.msra.mxu0 0.0
    %882 = vmatprep.subr.mxu0 0.0
    %883 = vmatpush1.msra.mxu0 0.0
    %884 = vmatprep.subr.mxu0 0.0
    %885 = vmatpush1.msra.mxu0 0.0
    %886 = vmatprep.subr.mxu0 0.0
    %887 = vmatpush1.msra.mxu0 0.0
    %888 = vmatprep.subr.mxu0 0.0
    %889 = vmatpush1.msra.mxu0 0.0
    %890 = vmatprep.subr.mxu0 0.0
    %891 = vmatpush1.msra.mxu0 0.0
    %892 = vmatprep.subr.mxu0 0.0
    %893 = vmatpush1.msra.mxu0 0.0
    %894 = vmatprep.subr.mxu0 0.0
    %895 = vmatpush1.msra.mxu0 0.0
    %896 = vmatprep.subr.mxu0 0.0
    %897 = vmatpush1.msra.mxu0 0.0
    %898 = vmatprep.subr.mxu0 0.0
    %899 = vmatpush1.msra.mxu0 0.0
    %900 = vmatprep.subr.mxu0 0.0
    %901 = vmatpush1.msra.mxu0 0.0
    %902 = vmatprep.subr.mxu0 0.0
    %903 = vmatpush1.msra.mxu0 0.0
    %904 = vmatprep.subr.mxu0 0.0
    %905 = vmatpush1.msra.mxu0 0.0
    %906 = vmatprep.subr.mxu0 0.0
    %907 = vmatpush1.msra.mxu0 %v183
    %908 = vmatprep.subr.mxu0 0.0
    %909 = vmatpush2.msra.mxu0 0.0
    %910 = vmatprep.subr.mxu0 0.0
    %911 = vmatpush2.msra.mxu0 0.0
    %912 = vmatprep.subr.mxu0 0.0
    %913 = vmatpush2.msra.mxu0 0.0
    %914 = vmatprep.subr.mxu0 0.0
    %915 = vmatpush2.msra.mxu0 0.0
    %916 = vmatprep.subr.mxu0 0.0
    %917 = vmatpush2.msra.mxu0 0.0
    %918 = vmatprep.subr.mxu0 0.0
    %919 = vmatpush2.msra.mxu0 0.0
    %920 = vmatprep.subr.mxu0 0.0
    %921 = vmatpush2.msra.mxu0 0.0
    %922 = vmatprep.subr.mxu0 0.0
    %923 = vmatpush2.msra.mxu0 0.0
    %924 = vmatprep.subr.mxu0 0.0
    %925 = vmatpush2.msra.mxu0 0.0
    %926 = vmatprep.subr.mxu0 0.0
    %927 = vmatpush2.msra.mxu0 0.0
    %928 = vmatprep.subr.mxu0 0.0
    %929 = vmatpush2.msra.mxu0 0.0
    %930 = vmatprep.subr.mxu0 0.0
    %931 = vmatpush2.msra.mxu0 0.0
    %932 = vmatprep.subr.mxu0 0.0
    %933 = vmatpush2.msra.mxu0 0.0
    %934 = vmatprep.subr.mxu0 0.0
    %935 = vmatpush2.msra.mxu0 0.0
    %936 = vmatprep.subr.mxu0 0.0
    %937 = vmatpush2.msra.mxu0 0.0
    %938 = vmatprep.subr.mxu0 0.0
    %939 = vmatpush2.msra.mxu0 0.0
    %940 = vmatprep.mubr.f32.mxu0 0.0
    %941 = vmatmul.mubr.f32.gmra.mxu0 %v874
    %v942 = vpop.f32.mrf.mxu0
    %v943 = vadd.f32 0.0, %v942
    %v944 = vpop.f32.mrf.mxu0
    %945 = vdwg.mxu0
    %v947 = vrot.slane %v943, 3
    %v948 = vrot.slane %v943, 4
    %v951 = vadd.f32 %v168, %v947
    %v952 = vadd.f32 %v173, %v948
    %v953 = vxor.u32 %v951, 2147483648
    %v954 = vxor.u32 %v952, 2147483648
    %v955 = vmul.f32 %v953, 1.442695
    %v956 = vpow.pop %v955
    %v957 = vmul.f32 %v954, 1.442695
    %v958 = vpow.pop %v957
    %v959 = vadd.f32 %v956, 1.0
    %v960 = vadd.f32 %v958, 1.0
    %v961 = vrcp.pop %v959
    %v962 = vmul.f32 1.0, %v961
    %v963 = vrcp.pop %v960
    %v964 = vmul.f32 1.0, %v963
    %v965 = vtanh.pop %v951
    %v966 = vtanh.pop %v952
    %v969 = vrot.slane %v853, 7
    %v970 = vrot.slane %v854, 7
    %v973 = vmul.f32 %v962, %v969
    %v974 = vmul.f32 %v964, %v970
    %977 = vrot.lane.b32.xlu0 %v965, 118
    %v978 = vpop.permute.xlu0 %977
    %979 = vrot.lane.b32.xlu0 %v966, 118
    %v980 = vpop.permute.xlu0 %979
    %v983 = vmul.f32 %v962, %v978
    %v984 = vmul.f32 %v964, %v980
    %987 = vrot.lane.b32.xlu0 %v983, 5
    %v988 = vpop.permute.xlu0 %987
    %989 = vrot.lane.b32.xlu0 %v984, 5
    %v990 = vpop.permute.xlu0 %989
    %v993 = vadd.f32 %v973, %v988
    %v994 = vadd.f32 %v974, %v990
    %v995 = vtanh.pop %v993
    %v996 = vtanh.pop %v994
    %999 = vrot.lane.b32.xlu0 %v995, 10
    %v1000 = vpop.permute.xlu0 %999
    %1001 = vrot.lane.b32.xlu0 %v996, 10
    %v1002 = vpop.permute.xlu0 %1001
    %v1005 = vmul.f32 %v962, %v1000
    %v1006 = vmul.f32 %v964, %v1002
    %v1009 = vrot.slane %v1005, 5
    %v1010 = vrot.slane %v1006, 4
    %v1011 = vsel %vm312, %v1010, %v1009
    %1012 = vrot.lane.b32.xlu0 %v1011, 113
    %v1013 = vpop.permute.xlu0 %1012
    %v1014 = vsel %vm177, %v1013, 0
    %1016 = vmatprep.subr.mxu0 0.0
    %1017 = vmatpush1.msra.mxu0 0.0
    %1018 = vmatprep.subr.mxu0 0.0
    %1019 = vmatpush1.msra.mxu0 0.0
    %1020 = vmatprep.subr.mxu0 0.0
    %1021 = vmatpush1.msra.mxu0 0.0
    %1022 = vmatprep.subr.mxu0 0.0
    %1023 = vmatpush1.msra.mxu0 0.0
    %1024 = vmatprep.subr.mxu0 0.0
    %1025 = vmatpush1.msra.mxu0 0.0
    %1026 = vmatprep.subr.mxu0 0.0
    %1027 = vmatpush1.msra.mxu0 0.0
    %1028 = vmatprep.subr.mxu0 0.0
    %1029 = vmatpush1.msra.mxu0 0.0
    %1030 = vmatprep.subr.mxu0 0.0
    %1031 = vmatpush1.msra.mxu0 0.0
    %1032 = vmatprep.subr.mxu0 0.0
    %1033 = vmatpush1.msra.mxu0 0.0
    %1034 = vmatprep.subr.mxu0 0.0
    %1035 = vmatpush1.msra.mxu0 0.0
    %1036 = vmatprep.subr.mxu0 0.0
    %1037 = vmatpush1.msra.mxu0 0.0
    %1038 = vmatprep.subr.mxu0 0.0
    %1039 = vmatpush1.msra.mxu0 0.0
    %1040 = vmatprep.subr.mxu0 0.0
    %1041 = vmatpush1.msra.mxu0 0.0
    %1042 = vmatprep.subr.mxu0 0.0
    %1043 = vmatpush1.msra.mxu0 0.0
    %1044 = vmatprep.subr.mxu0 0.0
    %1045 = vmatpush1.msra.mxu0 0.0
    %1046 = vmatprep.subr.mxu0 0.0
    %1047 = vmatpush1.msra.mxu0 %v183
    %1048 = vmatprep.subr.mxu0 0.0
    %1049 = vmatpush2.msra.mxu0 0.0
    %1050 = vmatprep.subr.mxu0 0.0
    %1051 = vmatpush2.msra.mxu0 0.0
    %1052 = vmatprep.subr.mxu0 0.0
    %1053 = vmatpush2.msra.mxu0 0.0
    %1054 = vmatprep.subr.mxu0 0.0
    %1055 = vmatpush2.msra.mxu0 0.0
    %1056 = vmatprep.subr.mxu0 0.0
    %1057 = vmatpush2.msra.mxu0 0.0
    %1058 = vmatprep.subr.mxu0 0.0
    %1059 = vmatpush2.msra.mxu0 0.0
    %1060 = vmatprep.subr.mxu0 0.0
    %1061 = vmatpush2.msra.mxu0 0.0
    %1062 = vmatprep.subr.mxu0 0.0
    %1063 = vmatpush2.msra.mxu0 0.0
    %1064 = vmatprep.subr.mxu0 0.0
    %1065 = vmatpush2.msra.mxu0 0.0
    %1066 = vmatprep.subr.mxu0 0.0
    %1067 = vmatpush2.msra.mxu0 0.0
    %1068 = vmatprep.subr.mxu0 0.0
    %1069 = vmatpush2.msra.mxu0 0.0
    %1070 = vmatprep.subr.mxu0 0.0
    %1071 = vmatpush2.msra.mxu0 0.0
    %1072 = vmatprep.subr.mxu0 0.0
    %1073 = vmatpush2.msra.mxu0 0.0
    %1074 = vmatprep.subr.mxu0 0.0
    %1075 = vmatpush2.msra.mxu0 0.0
    %1076 = vmatprep.subr.mxu0 0.0
    %1077 = vmatpush2.msra.mxu0 0.0
    %1078 = vmatprep.subr.mxu0 0.0
    %1079 = vmatpush2.msra.mxu0 0.0
    %1080 = vmatprep.mubr.f32.mxu0 0.0
    %1081 = vmatmul.mubr.f32.gmra.mxu0 %v1014
    %v1082 = vpop.f32.mrf.mxu0
    %v1083 = vadd.f32 0.0, %v1082
    %v1084 = vpop.f32.mrf.mxu0
    %1085 = vdwg.mxu0
    %v1087 = vrot.slane %v1083, 2
    %v1088 = vrot.slane %v1083, 3
    %v1091 = vadd.f32 %v168, %v1087
    %v1092 = vadd.f32 %v173, %v1088
    %v1093 = vxor.u32 %v1091, 2147483648
    %v1094 = vxor.u32 %v1092, 2147483648
    %v1095 = vmul.f32 %v1093, 1.442695
    %v1096 = vpow.pop %v1095
    %v1097 = vmul.f32 %v1094, 1.442695
    %v1098 = vpow.pop %v1097
    %v1099 = vadd.f32 %v1096, 1.0
    %v1100 = vadd.f32 %v1098, 1.0
    %v1101 = vrcp.pop %v1099
    %v1102 = vmul.f32 1.0, %v1101
    %v1103 = vrcp.pop %v1100
    %v1104 = vmul.f32 1.0, %v1103
    %v1105 = vtanh.pop %v1091
    %v1106 = vtanh.pop %v1092
    %v1109 = vrot.slane %v993, 7
    %v1110 = vrot.slane %v994, 7
    %v1113 = vmul.f32 %v1102, %v1109
    %v1114 = vmul.f32 %v1104, %v1110
    %1117 = vrot.lane.b32.xlu0 %v1105, 118
    %v1118 = vpop.permute.xlu0 %1117
    %1119 = vrot.lane.b32.xlu0 %v1106, 118
    %v1120 = vpop.permute.xlu0 %1119
    %v1123 = vmul.f32 %v1102, %v1118
    %v1124 = vmul.f32 %v1104, %v1120
    %1127 = vrot.lane.b32.xlu0 %v1123, 5
    %v1128 = vpop.permute.xlu0 %1127
    %1129 = vrot.lane.b32.xlu0 %v1124, 5
    %v1130 = vpop.permute.xlu0 %1129
    %v1133 = vadd.f32 %v1113, %v1128
    %v1134 = vadd.f32 %v1114, %v1130
    %v1135 = vtanh.pop %v1133
    %v1136 = vtanh.pop %v1134
    %1139 = vrot.lane.b32.xlu0 %v1135, 10
    %v1140 = vpop.permute.xlu0 %1139
    %1141 = vrot.lane.b32.xlu0 %v1136, 10
    %v1142 = vpop.permute.xlu0 %1141
    %v1145 = vmul.f32 %v1102, %v1140
    %v1146 = vmul.f32 %v1104, %v1142
    %v1149 = vrot.slane %v1145, 6
    %v1150 = vrot.slane %v1146, 5
    %v1151 = vsel %vm312, %v1150, %v1149
    %1152 = vrot.lane.b32.xlu0 %v1151, 113
    %v1153 = vpop.permute.xlu0 %1152
    %v1154 = vsel %vm177, %v1153, 0
    %1156 = vmatprep.subr.mxu0 0.0
    %1157 = vmatpush1.msra.mxu0 0.0
    %1158 = vmatprep.subr.mxu0 0.0
    %1159 = vmatpush1.msra.mxu0 0.0
    %1160 = vmatprep.subr.mxu0 0.0
    %1161 = vmatpush1.msra.mxu0 0.0
    %1162 = vmatprep.subr.mxu0 0.0
    %1163 = vmatpush1.msra.mxu0 0.0
    %1164 = vmatprep.subr.mxu0 0.0
    %1165 = vmatpush1.msra.mxu0 0.0
    %1166 = vmatprep.subr.mxu0 0.0
    %1167 = vmatpush1.msra.mxu0 0.0
    %1168 = vmatprep.subr.mxu0 0.0
    %1169 = vmatpush1.msra.mxu0 0.0
    %1170 = vmatprep.subr.mxu0 0.0
    %1171 = vmatpush1.msra.mxu0 0.0
    %1172 = vmatprep.subr.mxu0 0.0
    %1173 = vmatpush1.msra.mxu0 0.0
    %1174 = vmatprep.subr.mxu0 0.0
    %1175 = vmatpush1.msra.mxu0 0.0
    %1176 = vmatprep.subr.mxu0 0.0
    %1177 = vmatpush1.msra.mxu0 0.0
    %1178 = vmatprep.subr.mxu0 0.0
    %1179 = vmatpush1.msra.mxu0 0.0
    %1180 = vmatprep.subr.mxu0 0.0
    %1181 = vmatpush1.msra.mxu0 0.0
    %1182 = vmatprep.subr.mxu0 0.0
    %1183 = vmatpush1.msra.mxu0 0.0
    %1184 = vmatprep.subr.mxu0 0.0
    %1185 = vmatpush1.msra.mxu0 0.0
    %1186 = vmatprep.subr.mxu0 0.0
    %1187 = vmatpush1.msra.mxu0 %v183
    %1188 = vmatprep.subr.mxu0 0.0
    %1189 = vmatpush2.msra.mxu0 0.0
    %1190 = vmatprep.subr.mxu0 0.0
    %1191 = vmatpush2.msra.mxu0 0.0
    %1192 = vmatprep.subr.mxu0 0.0
    %1193 = vmatpush2.msra.mxu0 0.0
    %1194 = vmatprep.subr.mxu0 0.0
    %1195 = vmatpush2.msra.mxu0 0.0
    %1196 = vmatprep.subr.mxu0 0.0
    %1197 = vmatpush2.msra.mxu0 0.0
    %1198 = vmatprep.subr.mxu0 0.0
    %1199 = vmatpush2.msra.mxu0 0.0
    %1200 = vmatprep.subr.mxu0 0.0
    %1201 = vmatpush2.msra.mxu0 0.0
    %1202 = vmatprep.subr.mxu0 0.0
    %1203 = vmatpush2.msra.mxu0 0.0
    %1204 = vmatprep.subr.mxu0 0.0
    %1205 = vmatpush2.msra.mxu0 0.0
    %1206 = vmatprep.subr.mxu0 0.0
    %1207 = vmatpush2.msra.mxu0 0.0
    %1208 = vmatprep.subr.mxu0 0.0
    %1209 = vmatpush2.msra.mxu0 0.0
    %1210 = vmatprep.subr.mxu0 0.0
    %1211 = vmatpush2.msra.mxu0 0.0
    %1212 = vmatprep.subr.mxu0 0.0
    %1213 = vmatpush2.msra.mxu0 0.0
    %1214 = vmatprep.subr.mxu0 0.0
    %1215 = vmatpush2.msra.mxu0 0.0
    %1216 = vmatprep.subr.mxu0 0.0
    %1217 = vmatpush2.msra.mxu0 0.0
    %1218 = vmatprep.subr.mxu0 0.0
    %1219 = vmatpush2.msra.mxu0 0.0
    %1220 = vmatprep.mubr.f32.mxu0 0.0
    %1221 = vmatmul.mubr.f32.gmra.mxu0 %v1154
    %v1222 = vpop.f32.mrf.mxu0
    %v1223 = vadd.f32 0.0, %v1222
    %v1224 = vpop.f32.mrf.mxu0
    %1225 = vdwg.mxu0
    %v1227 = vrot.slane %v1223, 1
    %v1228 = vrot.slane %v1223, 2
    %v1231 = vadd.f32 %v168, %v1227
    %v1232 = vadd.f32 %v173, %v1228
    %v1233 = vxor.u32 %v1231, 2147483648
    %v1234 = vxor.u32 %v1232, 2147483648
    %v1235 = vmul.f32 %v1233, 1.442695
    %v1236 = vpow.pop %v1235
    %v1237 = vmul.f32 %v1234, 1.442695
    %v1238 = vpow.pop %v1237
    %v1239 = vadd.f32 %v1236, 1.0
    %v1240 = vadd.f32 %v1238, 1.0
    %v1241 = vrcp.pop %v1239
    %v1242 = vmul.f32 1.0, %v1241
    %v1243 = vrcp.pop %v1240
    %v1244 = vmul.f32 1.0, %v1243
    %v1245 = vtanh.pop %v1231
    %v1246 = vtanh.pop %v1232
    %v1249 = vrot.slane %v1133, 7
    %v1250 = vrot.slane %v1134, 7
    %v1253 = vmul.f32 %v1242, %v1249
    %v1254 = vmul.f32 %v1244, %v1250
    %1257 = vrot.lane.b32.xlu0 %v1245, 118
    %v1258 = vpop.permute.xlu0 %1257
    %1259 = vrot.lane.b32.xlu0 %v1246, 118
    %v1260 = vpop.permute.xlu0 %1259
    %v1263 = vmul.f32 %v1242, %v1258
    %v1264 = vmul.f32 %v1244, %v1260
    %1267 = vrot.lane.b32.xlu0 %v1263, 5
    %v1268 = vpop.permute.xlu0 %1267
    %1269 = vrot.lane.b32.xlu0 %v1264, 5
    %v1270 = vpop.permute.xlu0 %1269
    %v1273 = vadd.f32 %v1253, %v1268
    %v1274 = vadd.f32 %v1254, %v1270
    %v1275 = vtanh.pop %v1273
    %v1276 = vtanh.pop %v1274
    %1279 = vrot.lane.b32.xlu0 %v1275, 10
    %v1280 = vpop.permute.xlu0 %1279
    %1281 = vrot.lane.b32.xlu0 %v1276, 10
    %v1282 = vpop.permute.xlu0 %1281
    %v1285 = vmul.f32 %v1242, %v1280
    %v1286 = vmul.f32 %v1244, %v1282
    %v1287 = vxor.u32 %v168, 2147483648
    %v1288 = vxor.u32 %v173, 2147483648
    %v1289 = vmul.f32 %v1287, 1.442695
    %v1290 = vpow.pop %v1289
    %v1291 = vmul.f32 %v1288, 1.442695
    %v1292 = vpow.pop %v1291
    %v1293 = vadd.f32 %v1290, 1.0
    %v1294 = vadd.f32 %v1292, 1.0
    %v1295 = vrcp.pop %v1293
    %v1296 = vmul.f32 1.0, %v1295
    %v1297 = vrcp.pop %v1294
    %v1298 = vmul.f32 1.0, %v1297
    %v1299 = vtanh.pop %v168
    %v1300 = vtanh.pop %v173
    %1303 = vrot.lane.b32.xlu0 %v1299, 118
    %v1304 = vpop.permute.xlu0 %1303
    %1305 = vrot.lane.b32.xlu0 %v1300, 118
    %v1306 = vpop.permute.xlu0 %1305
    %v1309 = vmul.f32 %v1296, %v1304
    %v1310 = vmul.f32 %v1298, %v1306
    %v1311 = vtanh.pop %v1309
    %v1312 = vtanh.pop %v1310
    %1315 = vrot.lane.b32.xlu0 %v1311, 15
    %v1316 = vpop.permute.xlu0 %1315
    %1317 = vrot.lane.b32.xlu0 %v1312, 15
    %v1318 = vpop.permute.xlu0 %1317
    %v1321 = vmul.f32 %v1296, %v1316
    %v1322 = vmul.f32 %v1298, %v1318
    %v1325 = vrot.slane %v1286, 7
    %1326 = vrot.lane.b32.xlu0 %v1285, 113
    %v1327 = vpop.permute.xlu0 %1326
    %1328 = vrot.lane.b32.xlu0 %v1325, 113
    %v1329 = vpop.permute.xlu0 %1328
    %v1334 = vrot.slane %v1322, 7
    %1335 = vrot.lane.b32.xlu0 %v1321, 98
    %v1336 = vpop.permute.xlu0 %1335
    %1337 = vrot.lane.b32.xlu0 %v1334, 98
    %v1338 = vpop.permute.xlu0 %1337
    %v1341 = vsel %vm177, %v1327, %v1336
    %v1342 = vsel %vm177, %v1329, %v1338
    %v1343 = vld [vmem:[#allocation8] sm:$0xff]
    %v1344 = vld [vmem:[#allocation8 + $0x8] sm:$0x3]
    %v1345 = vld [vmem:[%s5] sm:$0x1]
    %v1347 = vlaneseq
    %v1348 = vshrl.u32 %v1347, 7
    %v1349 = vsub.s32 0, %v1348
    %v1350 = vrot.slane %v1345, %v1349
    %vm1354 = vcmask 1040384
    %v1355 = vrot.slane %v1341, 7
    %v1356 = vrot.slane %v1342, 7
    %v1357 = vsel %vm1354, %v1355, %v1356
    %vm1358 = vcmask 80896
    %v1359 = vsel %vm1358, %v1357, 0
    %vm1361 = vcmask 1041408
    %v1363 = vsel %vm1361, %v1344, 0
    %1365 = vmatprep.subr.mxu0 0.0
    %1366 = vmatpush1.msra.mxu0 0.0
    %1367 = vmatprep.subr.mxu0 0.0
    %1368 = vmatpush1.msra.mxu0 0.0
    %1369 = vmatprep.subr.mxu0 0.0
    %1370 = vmatpush1.msra.mxu0 0.0
    %1371 = vmatprep.subr.mxu0 0.0
    %1372 = vmatpush1.msra.mxu0 0.0
    %1373 = vmatprep.subr.mxu0 0.0
    %1374 = vmatpush1.msra.mxu0 0.0
    %1375 = vmatprep.subr.mxu0 0.0
    %1376 = vmatpush1.msra.mxu0 0.0
    %1377 = vmatprep.subr.mxu0 0.0
    %1378 = vmatpush1.msra.mxu0 0.0
    %1379 = vmatprep.subr.mxu0 0.0
    %1380 = vmatpush1.msra.mxu0 0.0
    %1381 = vmatprep.subr.mxu0 0.0
    %1382 = vmatpush1.msra.mxu0 0.0
    %1383 = vmatprep.subr.mxu0 0.0
    %1384 = vmatpush1.msra.mxu0 0.0
    %1385 = vmatprep.subr.mxu0 0.0
    %1386 = vmatpush1.msra.mxu0 0.0
    %1387 = vmatprep.subr.mxu0 0.0
    %1388 = vmatpush1.msra.mxu0 0.0
    %1389 = vmatprep.subr.mxu0 0.0
    %1390 = vmatpush1.msra.mxu0 0.0
    %1391 = vmatprep.subr.mxu0 0.0
    %1392 = vmatpush1.msra.mxu0 0.0
    %1393 = vmatprep.subr.mxu0 0.0
    %1394 = vmatpush1.msra.mxu0 %v1363
    %1395 = vmatprep.subr.mxu0 0.0
    %1396 = vmatpush1.msra.mxu0 %v1343
    %1397 = vmatprep.subr.mxu0 0.0
    %1398 = vmatpush2.msra.mxu0 0.0
    %1399 = vmatprep.subr.mxu0 0.0
    %1400 = vmatpush2.msra.mxu0 0.0
    %1401 = vmatprep.subr.mxu0 0.0
    %1402 = vmatpush2.msra.mxu0 0.0
    %1403 = vmatprep.subr.mxu0 0.0
    %1404 = vmatpush2.msra.mxu0 0.0
    %1405 = vmatprep.subr.mxu0 0.0
    %1406 = vmatpush2.msra.mxu0 0.0
    %1407 = vmatprep.subr.mxu0 0.0
    %1408 = vmatpush2.msra.mxu0 0.0
    %1409 = vmatprep.subr.mxu0 0.0
    %1410 = vmatpush2.msra.mxu0 0.0
    %1411 = vmatprep.subr.mxu0 0.0
    %1412 = vmatpush2.msra.mxu0 0.0
    %1413 = vmatprep.subr.mxu0 0.0
    %1414 = vmatpush2.msra.mxu0 0.0
    %1415 = vmatprep.subr.mxu0 0.0
    %1416 = vmatpush2.msra.mxu0 0.0
    %1417 = vmatprep.subr.mxu0 0.0
    %1418 = vmatpush2.msra.mxu0 0.0
    %1419 = vmatprep.subr.mxu0 0.0
    %1420 = vmatpush2.msra.mxu0 0.0
    %1421 = vmatprep.subr.mxu0 0.0
    %1422 = vmatpush2.msra.mxu0 0.0
    %1423 = vmatprep.subr.mxu0 0.0
    %1424 = vmatpush2.msra.mxu0 0.0
    %1425 = vmatprep.subr.mxu0 0.0
    %1426 = vmatpush2.msra.mxu0 0.0
    %1427 = vmatprep.subr.mxu0 0.0
    %1428 = vmatpush2.msra.mxu0 0.0
    %1429 = vmatprep.mubr.f32.mxu0 0.0
    %1430 = vmatmul.mubr.f32.gmra.mxu0 %v1359
    %v1431 = vpop.f32.mrf.mxu0
    %v1432 = vadd.f32 %v1350, %v1431
    %v1433 = vpop.f32.mrf.mxu0
    %1434 = vdwg.mxu0
    %vm1435 = vcmask 214016
    %1436 = vst.msk [vmem:[#allocation10] sm:$0x3] %vm1435, %v1432
    // Predicated region
    $region42: #{tpu_custom_call.1} parent=1 // pred_check
      _
    $region43: #{tpu_custom_call.1} parent=1 // pred_check_branch
      %1438 = sbr.rel (0) target = $region45
    $region44: #{tpu_custom_call.1} parent=1 // pred_region
      %s1440 = ssub.s32 32, 32
      %1441 = vsyncadd [#allocation4], %s1440
      %s1443 = sshll.u32 [#allocation10], 4
      %s1444 = int_to_ptr.vmem [resolvable:$true] %s1443
      %1446 = dma.vmem_to_hbm [thread:$0]  %s1444, 32, %s6, [#allocation4]
    $region45: #{tpu_custom_call.1} parent=1 // pred_fallthru
      _
    // Predicated region
    $region46: #{tpu_custom_call.1} parent=1 // pred_check
      _
    $region47: #{tpu_custom_call.1} parent=1 // pred_check_branch
      %1448 = sbr.rel (0) target = $region49
    $region48: #{tpu_custom_call.1} parent=1 // pred_region
      %1449 = dma.done [#allocation4], 32
    $region49: #{tpu_custom_call.1} parent=1 // pred_fallthru
      _
    %1450 = vsyncpa [#allocation3], 1
    %1451 = vsyncpa [#allocation6], 1
    %1452 = vsyncpa [#allocation9], 1
    %1453 = vsyncpa [#allocation4], 1

</llo_original>
